<compile_context>
chip_gen: v5e
topology: v5e:2x2
jax: 0.10.0
libtpu: 0.0.40
codegen_flags: <defaults>
</compile_context>

<pallas_src>
import functools

import jax
import jax.numpy as jnp
from jax.experimental import pallas as pl
from jax.experimental.pallas import tpu as pltpu


def _round_up(n, m):
    return ((n + m - 1) // m) * m


def rownet_kernel(x_ref, w1_ref, b1_ref, w2_ref, b2_ref, w3_ref, b3_ref, o_ref,
                  *, compute_dtype):
    """One batch-tile of: leaky_relu(leaky_relu(x@W1+b1)@W2+b2)@W3+b3.

    Matmul operands are `compute_dtype` (bf16 by default) for MXU throughput;
    accumulation, bias add and the activation run in f32.
    """
    # NOTE: the spec's RowNet uses F.leaky_relu(..., negative_slope=0.2).
    # jnp.maximum(h, slope*h) == leaky_relu(h, slope) only for slope in [0, 1].
    neg_slope = 0.2

    x = x_ref[...].astype(compute_dtype)

    # fc1 + leaky_relu  (f32 accumulate, f32 epilogue)
    h = jnp.dot(x, w1_ref[...], preferred_element_type=jnp.float32) + b1_ref[...]
    h = jnp.maximum(h, neg_slope * h)          # single vmax instead of cmp+select

    # fc2 + leaky_relu
    h = jnp.dot(h.astype(compute_dtype), w2_ref[...],
                preferred_element_type=jnp.float32) + b2_ref[...]
    h = jnp.maximum(h, neg_slope * h)

    # fc3 (no activation)
    o = jnp.dot(h.astype(compute_dtype), w3_ref[...],
                preferred_element_type=jnp.float32) + b3_ref[...]
    o_ref[...] = o.astype(o_ref.dtype)


def rownet_forward(x, params, *, tile_b=None, compute_dtype=jnp.bfloat16,
                   out_dtype=None):
    """x: (B, D) -> (B, E).  Weights stored as (in, out); biases as (1, out).

    compute_dtype: MXU operand dtype (bf16 default; use jnp.float32 for exact
        PyTorch-style f32 math).
    out_dtype: output dtype (default x.dtype; pass jnp.bfloat16 if the consumer
        accepts it — the output store is the largest HBM stream per step).
    """
    w1, b1, w2, b2, w3, b3 = params
    B, D = x.shape
    E = w3.shape[1]
    out_dtype = x.dtype if out_dtype is None else jnp.dtype(out_dtype)

    # Cast weights once in the wrapper (halves their VMEM / DMA footprint when
    # compute_dtype=bf16); biases stay f32 so the accumulate+epilogue is f32.
    w1c = w1.astype(compute_dtype)
    w2c = w2.astype(compute_dtype)
    w3c = w3.astype(compute_dtype)
    b1f = b1.astype(jnp.float32)
    b2f = b2.astype(jnp.float32)
    b3f = b3.astype(jnp.float32)

    # Batch tile: fill the MXU M dimension and amortize per-step overhead.
    # Multiple of 16 satisfies the (8,128) block constraint and bf16 packing.
    if tile_b is None:
        tile_b = min(2048, _round_up(B, 16))
        # v7x megacore: guarantee >= 2 grid steps (when possible) so the
        # "parallel" batch axis can be sharded across both TensorCores.
        if pl.cdiv(B, tile_b) == 1 and tile_b >= 32:
            tile_b = _round_up(pl.cdiv(tile_b, 2), 16)
    tile_b = max(16, _round_up(tile_b, 16))

    # No padding: Pallas handles the ragged last block (masked writeback).
    grid = (pl.cdiv(B, tile_b),)

    rows = lambda i: (i, 0)          # batch tiles march down the rows
    full = lambda i: (0, 0)          # weights/biases: same block every step

    itemsize = lambda a: a.size * a.dtype.itemsize
    cost = pl.CostEstimate(
        flops=2 * B * (D * D + D * D + D * E),
        transcendentals=0,
        bytes_accessed=(itemsize(x)
                        + sum(itemsize(a) for a in (w1c, b1f, w2c, b2f, w3c, b3f))
                        + B * E * out_dtype.itemsize),
    )

    def run(single_buffer_weights):
        if single_buffer_weights:
            # Constant index_map -> a single resident copy is enough; default
            # double-buffering would waste VMEM on a second identical copy.
            wspec = lambda shape: pl.BlockSpec(shape, full,
                                               pipeline_mode=pl.Buffered(1))
            n_wbuf = 1
        else:
            wspec = lambda shape: pl.BlockSpec(shape, full)
            n_wbuf = 2

        # Explicit VMEM budget: resident weights/biases (x buffer count) plus
        # double-buffered x/out tiles, 1.5x + 2 MiB headroom for compiler
        # scratch, capped at v7x's 64 MiB physical VMEM.
        resident = n_wbuf * sum(itemsize(a)
                                for a in (w1c, b1f, w2c, b2f, w3c, b3f))
        streamed = 2 * tile_b * (D * x.dtype.itemsize + E * out_dtype.itemsize)
        vmem_limit = min(int(1.5 * (resident + streamed)) + (2 << 20), 64 << 20)

        return pl.pallas_call(
            functools.partial(rownet_kernel, compute_dtype=compute_dtype),
            out_shape=jax.ShapeDtypeStruct((B, E), out_dtype),
            grid_spec=pltpu.PrefetchScalarGridSpec(
                num_scalar_prefetch=0,
                grid=grid,
                in_specs=[
                    pl.BlockSpec((tile_b, D), rows),   # x tile (streamed)
                    wspec((D, D)),                     # W1 (resident)
                    wspec((1, D)),                     # b1 (f32)
                    wspec((D, D)),                     # W2
                    wspec((1, D)),                     # b2
                    wspec((D, E)),                     # W3
                    wspec((1, E)),                     # b3
                ],
                out_specs=pl.BlockSpec((tile_b, E), rows),
            ),
            compiler_params=pltpu.CompilerParams(
                dimension_semantics=("parallel",),
                vmem_limit_bytes=vmem_limit),
            cost_estimate=cost,
        )(x, w1c, b1f, w2c, b2f, w3c, b3f)

    try:
        return run(single_buffer_weights=True)
    except Exception:
        # Fallback for JAX builds that reject pipeline_mode=pl.Buffered(1):
        # identical math, default double-buffered weights (just more VMEM).
        return run(single_buffer_weights=False)


def init_params(key, input_size, embed_dim, dtype=jnp.float32):
    """Deterministic init matching the shapes implied by RowNet.__init__.
    PyTorch Linear holds W as (out, in); we store the transpose (in, out)
    so the kernel computes x @ W directly (same math as x @ W_pt.T)."""
    ks = jax.random.split(key, 6)
    scale1 = 1.0 / jnp.sqrt(input_size)
    w1 = jax.random.uniform(ks[0], (input_size, input_size), dtype, -scale1, scale1)
    b1 = jax.random.uniform(ks[1], (1, input_size), dtype, -scale1, scale1)
    w2 = jax.random.uniform(ks[2], (input_size, input_size), dtype, -scale1, scale1)
    b2 = jax.random.uniform(ks[3], (1, input_size), dtype, -scale1, scale1)
    w3 = jax.random.uniform(ks[4], (input_size, embed_dim), dtype, -scale1, scale1)
    b3 = jax.random.uniform(ks[5], (1, embed_dim), dtype, -scale1, scale1)
    return (w1, b1, w2, b2, w3, b3)


def rownet_ref(x, params, compute_dtype=jnp.float32):
    """Pure-JAX reference.  With compute_dtype=bf16 it mirrors the kernel's
    bf16-operand / f32-accumulate math; with f32 it is the exact PyTorch math."""
    w1, b1, w2, b2, w3, b3 = params
    cd = compute_dtype
    lrelu = lambda v: jnp.maximum(v, 0.2 * v)
    h = lrelu(jnp.dot(x.astype(cd), w1.astype(cd),
                      preferred_element_type=jnp.float32) + b1.astype(jnp.float32))
    h = lrelu(jnp.dot(h.astype(cd), w2.astype(cd),
                      preferred_element_type=jnp.float32) + b2.astype(jnp.float32))
    return jnp.dot(h.astype(cd), w3.astype(cd),
                   preferred_element_type=jnp.float32) + b3.astype(jnp.float32)


if __name__ == "__main__":
    key = jax.random.PRNGKey(0)
    input_size, embed_dim = 128, 256

    kx, kp = jax.random.split(key)
    params = init_params(kp, input_size, embed_dim)

    # Ragged batch (not a multiple of the tile) exercises the no-pad path and
    # the >=2-grid-step split for v7x megacore.
    batch = 50
    x = jax.random.normal(kx, (batch, input_size), jnp.float32)

    out = jax.block_until_ready(rownet_forward(x, params))   # bf16 MXU, f32 acc
    assert out.shape == (batch, embed_dim), out.shape

    # Matched-precision reference (same bf16-operand math) — agrees tightly.
    ref_bf16 = rownet_ref(x, params, compute_dtype=jnp.bfloat16)
    assert jnp.allclose(out, ref_bf16, atol=1e-2, rtol=1e-2), "mismatch vs bf16 ref"

    # Full-f32 reference — loose sanity check on the bf16 rounding error.
    ref_f32 = rownet_ref(x, params, compute_dtype=jnp.float32)
    assert jnp.allclose(out, ref_f32, atol=5e-2, rtol=5e-2), "mismatch vs f32 ref"

    # f32 escape hatch (exact PyTorch-style math on the MXU).
    out_f32 = jax.block_until_ready(
        rownet_forward(x, params, compute_dtype=jnp.float32))
    assert jnp.allclose(out_f32, ref_f32, atol=2e-2, rtol=2e-2), "f32 path mismatch"

    print("KERNEL_OK")
</pallas_src>

<mosaic_0001>
module attributes {stable_mosaic.version = 11 : i64} {
  func.func @rownet_kernel(%arg0: i32, %arg1: memref<32x128xf32, #tpu.memory_space<vmem>>, %arg2: memref<128x128xbf16, #tpu.memory_space<vmem>>, %arg3: memref<1x128xf32, #tpu.memory_space<vmem>>, %arg4: memref<128x128xbf16, #tpu.memory_space<vmem>>, %arg5: memref<1x128xf32, #tpu.memory_space<vmem>>, %arg6: memref<128x256xbf16, #tpu.memory_space<vmem>>, %arg7: memref<1x256xf32, #tpu.memory_space<vmem>>, %arg8: memref<32x256xf32, #tpu.memory_space<vmem>>) attributes {dimension_semantics = [#tpu.dimension_semantics<parallel>], iteration_bounds = array<i64: 2>, scalar_prefetch = 0 : i64, scratch_operands = 0 : i64, tpu.core_type = #tpu.core_type<tc>, window_params = [{transform_indices = @transform_0, window_bounds = array<i64: 32, 128>}, {pipeline_mode = #tpu.pipeline_mode<synchronous>, transform_indices = @transform_1, window_bounds = array<i64: 128, 128>}, {pipeline_mode = #tpu.pipeline_mode<synchronous>, transform_indices = @transform_2, window_bounds = array<i64: 1, 128>}, {pipeline_mode = #tpu.pipeline_mode<synchronous>, transform_indices = @transform_3, window_bounds = array<i64: 128, 128>}, {pipeline_mode = #tpu.pipeline_mode<synchronous>, transform_indices = @transform_4, window_bounds = array<i64: 1, 128>}, {pipeline_mode = #tpu.pipeline_mode<synchronous>, transform_indices = @transform_5, window_bounds = array<i64: 128, 256>}, {pipeline_mode = #tpu.pipeline_mode<synchronous>, transform_indices = @transform_6, window_bounds = array<i64: 1, 256>}, {transform_indices = @transform_7, window_bounds = array<i64: 32, 256>}]} {
    %c0 = arith.constant 0 : index
    %c0_0 = arith.constant 0 : index
    %0 = vector.load %arg1[%c0, %c0_0] : memref<32x128xf32, #tpu.memory_space<vmem>>, vector<32x128xf32>
    %1 = arith.truncf %0 : vector<32x128xf32> to vector<32x128xbf16>
    %c0_1 = arith.constant 0 : index
    %c0_2 = arith.constant 0 : index
    %2 = vector.load %arg2[%c0_1, %c0_2] : memref<128x128xbf16, #tpu.memory_space<vmem>>, vector<128x128xbf16>
    %cst = arith.constant dense<0.000000e+00> : vector<32x128xf32>
    %3 = tpu.matmul %1, %2, %cst {dimension_numbers = #tpu.dot_dimension_numbers<[1], [0], [0], [1], [0, 0, 1, 1], [], []>} : vector<32x128xbf16>, vector<128x128xbf16>, vector<32x128xf32> -> vector<32x128xf32>
    %c0_3 = arith.constant 0 : index
    %c0_4 = arith.constant 0 : index
    %4 = vector.load %arg3[%c0_3, %c0_4] : memref<1x128xf32, #tpu.memory_space<vmem>>, vector<1x128xf32>
    %5 = vector.broadcast %4 : vector<1x128xf32> to vector<32x128xf32>
    %6 = arith.addf %3, %5 : vector<32x128xf32>
    %cst_5 = arith.constant 2.000000e-01 : f32
    %7 = vector.broadcast %cst_5 : f32 to vector<32x128xf32>
    %8 = arith.mulf %7, %6 : vector<32x128xf32>
    %9 = arith.maximumf %6, %8 : vector<32x128xf32>
    %10 = arith.truncf %9 : vector<32x128xf32> to vector<32x128xbf16>
    %c0_6 = arith.constant 0 : index
    %c0_7 = arith.constant 0 : index
    %11 = vector.load %arg4[%c0_6, %c0_7] : memref<128x128xbf16, #tpu.memory_space<vmem>>, vector<128x128xbf16>
    %cst_8 = arith.constant dense<0.000000e+00> : vector<32x128xf32>
    %12 = tpu.matmul %10, %11, %cst_8 {dimension_numbers = #tpu.dot_dimension_numbers<[1], [0], [0], [1], [0, 0, 1, 1], [], []>} : vector<32x128xbf16>, vector<128x128xbf16>, vector<32x128xf32> -> vector<32x128xf32>
    %c0_9 = arith.constant 0 : index
    %c0_10 = arith.constant 0 : index
    %13 = vector.load %arg5[%c0_9, %c0_10] : memref<1x128xf32, #tpu.memory_space<vmem>>, vector<1x128xf32>
    %14 = vector.broadcast %13 : vector<1x128xf32> to vector<32x128xf32>
    %15 = arith.addf %12, %14 : vector<32x128xf32>
    %cst_11 = arith.constant 2.000000e-01 : f32
    %16 = vector.broadcast %cst_11 : f32 to vector<32x128xf32>
    %17 = arith.mulf %16, %15 : vector<32x128xf32>
    %18 = arith.maximumf %15, %17 : vector<32x128xf32>
    %19 = arith.truncf %18 : vector<32x128xf32> to vector<32x128xbf16>
    %c0_12 = arith.constant 0 : index
    %c0_13 = arith.constant 0 : index
    %20 = vector.load %arg6[%c0_12, %c0_13] : memref<128x256xbf16, #tpu.memory_space<vmem>>, vector<128x256xbf16>
    %cst_14 = arith.constant dense<0.000000e+00> : vector<32x256xf32>
    %21 = tpu.matmul %19, %20, %cst_14 {dimension_numbers = #tpu.dot_dimension_numbers<[1], [0], [0], [1], [0, 0, 1, 1], [], []>} : vector<32x128xbf16>, vector<128x256xbf16>, vector<32x256xf32> -> vector<32x256xf32>
    %c0_15 = arith.constant 0 : index
    %c0_16 = arith.constant 0 : index
    %22 = vector.load %arg7[%c0_15, %c0_16] : memref<1x256xf32, #tpu.memory_space<vmem>>, vector<1x256xf32>
    %23 = vector.broadcast %22 : vector<1x256xf32> to vector<32x256xf32>
    %24 = arith.addf %21, %23 : vector<32x256xf32>
    %c0_17 = arith.constant 0 : index
    %c0_18 = arith.constant 0 : index
    %25 = vector.load %arg8[%c0_17, %c0_18] : memref<32x256xf32, #tpu.memory_space<vmem>>, vector<32x256xf32>
    tpu.vector_store %arg8[%c0_17, %c0_18], %24 {strides = array<i32>} : memref<32x256xf32, #tpu.memory_space<vmem>>, vector<32x256xf32>,
    return
  }
  func.func @transform_0(%arg0: i32) -> (i32, i32) {
    %c0_i32 = arith.constant 0 : i32
    %c0_i32_0 = arith.constant 0 : i32
    return %arg0, %c0_i32 : i32, i32
  }
  func.func @transform_1(%arg0: i32) -> (i32, i32) {
    %c0_i32 = arith.constant 0 : i32
    %c0_i32_0 = arith.constant 0 : i32
    %c0_i32_1 = arith.constant 0 : i32
    return %c0_i32, %c0_i32_0 : i32, i32
  }
  func.func @transform_2(%arg0: i32) -> (i32, i32) {
    %c0_i32 = arith.constant 0 : i32
    %c0_i32_0 = arith.constant 0 : i32
    %c0_i32_1 = arith.constant 0 : i32
    return %c0_i32, %c0_i32_0 : i32, i32
  }
  func.func @transform_3(%arg0: i32) -> (i32, i32) {
    %c0_i32 = arith.constant 0 : i32
    %c0_i32_0 = arith.constant 0 : i32
    %c0_i32_1 = arith.constant 0 : i32
    return %c0_i32, %c0_i32_0 : i32, i32
  }
  func.func @transform_4(%arg0: i32) -> (i32, i32) {
    %c0_i32 = arith.constant 0 : i32
    %c0_i32_0 = arith.constant 0 : i32
    %c0_i32_1 = arith.constant 0 : i32
    return %c0_i32, %c0_i32_0 : i32, i32
  }
  func.func @transform_5(%arg0: i32) -> (i32, i32) {
    %c0_i32 = arith.constant 0 : i32
    %c0_i32_0 = arith.constant 0 : i32
    %c0_i32_1 = arith.constant 0 : i32
    return %c0_i32, %c0_i32_0 : i32, i32
  }
  func.func @transform_6(%arg0: i32) -> (i32, i32) {
    %c0_i32 = arith.constant 0 : i32
    %c0_i32_0 = arith.constant 0 : i32
    %c0_i32_1 = arith.constant 0 : i32
    return %c0_i32, %c0_i32_0 : i32, i32
  }
  func.func @transform_7(%arg0: i32) -> (i32, i32) {
    %c0_i32 = arith.constant 0 : i32
    %c0_i32_0 = arith.constant 0 : i32
    return %arg0, %c0_i32 : i32, i32
  }
}

module attributes {stable_mosaic.version = 11 : i64} {
  func.func @rownet_kernel(%arg0: i32, %arg1: memref<32x128xf32, #tpu.memory_space<vmem>>, %arg2: memref<128x128xbf16, #tpu.memory_space<vmem>>, %arg3: memref<1x128xf32, #tpu.memory_space<vmem>>, %arg4: memref<128x128xbf16, #tpu.memory_space<vmem>>, %arg5: memref<1x128xf32, #tpu.memory_space<vmem>>, %arg6: memref<128x256xbf16, #tpu.memory_space<vmem>>, %arg7: memref<1x256xf32, #tpu.memory_space<vmem>>, %arg8: memref<32x256xf32, #tpu.memory_space<vmem>>) attributes {dimension_semantics = [#tpu.dimension_semantics<parallel>], iteration_bounds = array<i64: 2>, scalar_prefetch = 0 : i64, scratch_operands = 0 : i64, tpu.core_type = #tpu.core_type<tc>, window_params = [{transform_indices = @transform_0, window_bounds = array<i64: 32, 128>}, {pipeline_mode = #tpu.pipeline_mode<synchronous>, transform_indices = @transform_1, window_bounds = array<i64: 128, 128>}, {pipeline_mode = #tpu.pipeline_mode<synchronous>, transform_indices = @transform_2, window_bounds = array<i64: 1, 128>}, {pipeline_mode = #tpu.pipeline_mode<synchronous>, transform_indices = @transform_3, window_bounds = array<i64: 128, 128>}, {pipeline_mode = #tpu.pipeline_mode<synchronous>, transform_indices = @transform_4, window_bounds = array<i64: 1, 128>}, {pipeline_mode = #tpu.pipeline_mode<synchronous>, transform_indices = @transform_5, window_bounds = array<i64: 128, 256>}, {pipeline_mode = #tpu.pipeline_mode<synchronous>, transform_indices = @transform_6, window_bounds = array<i64: 1, 256>}, {transform_indices = @transform_7, window_bounds = array<i64: 32, 256>}]} {
    %c0 = arith.constant 0 : index
    %c0_0 = arith.constant 0 : index
    %0 = vector.load %arg1[%c0, %c0_0] : memref<32x128xf32, #tpu.memory_space<vmem>>, vector<32x128xf32>
    %1 = arith.truncf %0 : vector<32x128xf32> to vector<32x128xbf16>
    %c0_1 = arith.constant 0 : index
    %c0_2 = arith.constant 0 : index
    %2 = vector.load %arg2[%c0_1, %c0_2] : memref<128x128xbf16, #tpu.memory_space<vmem>>, vector<128x128xbf16>
    %cst = arith.constant dense<0.000000e+00> : vector<32x128xf32>
    %3 = tpu.matmul %1, %2, %cst {dimension_numbers = #tpu.dot_dimension_numbers<[1], [0], [0], [1], [0, 0, 1, 1], [], []>} : vector<32x128xbf16>, vector<128x128xbf16>, vector<32x128xf32> -> vector<32x128xf32>
    %c0_3 = arith.constant 0 : index
    %c0_4 = arith.constant 0 : index
    %4 = vector.load %arg3[%c0_3, %c0_4] : memref<1x128xf32, #tpu.memory_space<vmem>>, vector<1x128xf32>
    %5 = vector.broadcast %4 : vector<1x128xf32> to vector<32x128xf32>
    %6 = arith.addf %3, %5 : vector<32x128xf32>
    %cst_5 = arith.constant 2.000000e-01 : f32
    %7 = vector.broadcast %cst_5 : f32 to vector<32x128xf32>
    %8 = arith.mulf %7, %6 : vector<32x128xf32>
    %9 = arith.maximumf %6, %8 : vector<32x128xf32>
    %10 = arith.truncf %9 : vector<32x128xf32> to vector<32x128xbf16>
    %c0_6 = arith.constant 0 : index
    %c0_7 = arith.constant 0 : index
    %11 = vector.load %arg4[%c0_6, %c0_7] : memref<128x128xbf16, #tpu.memory_space<vmem>>, vector<128x128xbf16>
    %cst_8 = arith.constant dense<0.000000e+00> : vector<32x128xf32>
    %12 = tpu.matmul %10, %11, %cst_8 {dimension_numbers = #tpu.dot_dimension_numbers<[1], [0], [0], [1], [0, 0, 1, 1], [], []>} : vector<32x128xbf16>, vector<128x128xbf16>, vector<32x128xf32> -> vector<32x128xf32>
    %c0_9 = arith.constant 0 : index
    %c0_10 = arith.constant 0 : index
    %13 = vector.load %arg5[%c0_9, %c0_10] : memref<1x128xf32, #tpu.memory_space<vmem>>, vector<1x128xf32>
    %14 = vector.broadcast %13 : vector<1x128xf32> to vector<32x128xf32>
    %15 = arith.addf %12, %14 : vector<32x128xf32>
    %cst_11 = arith.constant 2.000000e-01 : f32
    %16 = vector.broadcast %cst_11 : f32 to vector<32x128xf32>
    %17 = arith.mulf %16, %15 : vector<32x128xf32>
    %18 = arith.maximumf %15, %17 : vector<32x128xf32>
    %19 = arith.truncf %18 : vector<32x128xf32> to vector<32x128xbf16>
    %c0_12 = arith.constant 0 : index
    %c0_13 = arith.constant 0 : index
    %20 = vector.load %arg6[%c0_12, %c0_13] : memref<128x256xbf16, #tpu.memory_space<vmem>>, vector<128x256xbf16>
    %cst_14 = arith.constant dense<0.000000e+00> : vector<32x256xf32>
    %21 = tpu.matmul %19, %20, %cst_14 {dimension_numbers = #tpu.dot_dimension_numbers<[1], [0], [0], [1], [0, 0, 1, 1], [], []>} : vector<32x128xbf16>, vector<128x256xbf16>, vector<32x256xf32> -> vector<32x256xf32>
    %c0_15 = arith.constant 0 : index
    %c0_16 = arith.constant 0 : index
    %22 = vector.load %arg7[%c0_15, %c0_16] : memref<1x256xf32, #tpu.memory_space<vmem>>, vector<1x256xf32>
    %23 = vector.broadcast %22 : vector<1x256xf32> to vector<32x256xf32>
    %24 = arith.addf %21, %23 : vector<32x256xf32>
    %c0_17 = arith.constant 0 : index
    %c0_18 = arith.constant 0 : index
    %25 = vector.load %arg8[%c0_17, %c0_18] : memref<32x256xf32, #tpu.memory_space<vmem>>, vector<32x256xf32>
    tpu.vector_store %arg8[%c0_17, %c0_18], %24 {strides = array<i32>} : memref<32x256xf32, #tpu.memory_space<vmem>>, vector<32x256xf32>,
    return
  }
  func.func @transform_0(%arg0: i32) -> (i32, i32) {
    %c0_i32 = arith.constant 0 : i32
    %c0_i32_0 = arith.constant 0 : i32
    return %arg0, %c0_i32 : i32, i32
  }
  func.func @transform_1(%arg0: i32) -> (i32, i32) {
    %c0_i32 = arith.constant 0 : i32
    %c0_i32_0 = arith.constant 0 : i32
    %c0_i32_1 = arith.constant 0 : i32
    return %c0_i32, %c0_i32_0 : i32, i32
  }
  func.func @transform_2(%arg0: i32) -> (i32, i32) {
    %c0_i32 = arith.constant 0 : i32
    %c0_i32_0 = arith.constant 0 : i32
    %c0_i32_1 = arith.constant 0 : i32
    return %c0_i32, %c0_i32_0 : i32, i32
  }
  func.func @transform_3(%arg0: i32) -> (i32, i32) {
    %c0_i32 = arith.constant 0 : i32
    %c0_i32_0 = arith.constant 0 : i32
    %c0_i32_1 = arith.constant 0 : i32
    return %c0_i32, %c0_i32_0 : i32, i32
  }
  func.func @transform_4(%arg0: i32) -> (i32, i32) {
    %c0_i32 = arith.constant 0 : i32
    %c0_i32_0 = arith.constant 0 : i32
    %c0_i32_1 = arith.constant 0 : i32
    return %c0_i32, %c0_i32_0 : i32, i32
  }
  func.func @transform_5(%arg0: i32) -> (i32, i32) {
    %c0_i32 = arith.constant 0 : i32
    %c0_i32_0 = arith.constant 0 : i32
    %c0_i32_1 = arith.constant 0 : i32
    return %c0_i32, %c0_i32_0 : i32, i32
  }
  func.func @transform_6(%arg0: i32) -> (i32, i32) {
    %c0_i32 = arith.constant 0 : i32
    %c0_i32_0 = arith.constant 0 : i32
    %c0_i32_1 = arith.constant 0 : i32
    return %c0_i32, %c0_i32_0 : i32, i32
  }
  func.func @transform_7(%arg0: i32) -> (i32, i32) {
    %c0_i32 = arith.constant 0 : i32
    %c0_i32_0 = arith.constant 0 : i32
    return %arg0, %c0_i32 : i32, i32
  }
}

</mosaic_0001>

<llo_original>
// kernel: tpu_custom_call.1
$region0: #{tpu_custom_call.1}
  #allocation0 [shape = 'u32[]', space=smem, size = 0x4, offset = 0x4, fixed_abs, tag = 'smem constant byte address 0x4 - core index']
  #allocation1 [shape = 'u32[72,128]{1,0:T(1,128)}', space=vmem, size = 0x9000, scoped, tag = 'internal scratch']
  %s0 = inlined_call_operand.hbm [shape: f32[50,128], index: 0, kind: input, shape index: {}]
  %s1 = inlined_call_operand.hbm [shape: bf16[128,128], index: 1, kind: input, shape index: {}]
  %s2 = inlined_call_operand.vmem [shape: f32[1,128], index: 2, kind: input, shape index: {}]
  %s3 = inlined_call_operand.hbm [shape: bf16[128,128], index: 3, kind: input, shape index: {}]
  %s4 = inlined_call_operand.hbm [shape: f32[1,128], index: 4, kind: input, shape index: {}]
  %s5 = inlined_call_operand.hbm [shape: bf16[128,256], index: 5, kind: input, shape index: {}]
  %s6 = inlined_call_operand.vmem [shape: f32[1,256], index: 6, kind: input, shape index: {}]
  %s7 = inlined_call_operand.hbm [shape: f32[50,256], index: 7, kind: output, shape index: {}]
  %s8 = sld [smem:[#allocation0]]
  $region81: #{tpu_custom_call.1} parent=0
    _
  %s10 = ssub.s32 1, %s8
  %s11 = scalar_select 0, %s10, %s8
  $region1: #{tpu_custom_call.1} parent=0
    #allocation2 [shape = 'u8[32768]{0}', space=vmem, size = 0x8000, scoped, tag = 'input window, operand 0']
    #allocation3 [shape = 's32[2]{0}', space=sflag, size = 0x8, scoped, tag = 'scoped memory for tpu_custom_call.1']
    #allocation4 [shape = 's32[2]{0}', space=sflag, size = 0x8, scoped, tag = 'scoped memory for tpu_custom_call.1']
    #allocation5 [shape = 'u8[32768]{0}', space=vmem, size = 0x8000, scoped, tag = 'input window, operand 1, single buffered']
    #allocation6 [shape = 's32[1]{0}', space=sflag, size = 0x4, scoped, tag = 'scoped memory for tpu_custom_call.1']
    #allocation7 [shape = 'u8[32768]{0}', space=vmem, size = 0x8000, scoped, tag = 'input window, operand 3, single buffered']
    #allocation8 [shape = 'u8[512]{0}', space=vmem, size = 0x400, scoped, tag = 'input window, operand 4, single buffered']
    #allocation9 [shape = 's32[1]{0}', space=sflag, size = 0x4, scoped, tag = 'scoped memory for tpu_custom_call.1']
    #allocation10 [shape = 'u8[65536]{0}', space=vmem, size = 0x10000, scoped, tag = 'input window, operand 5, single buffered']
    #allocation11 [shape = 'u8[65536]{0}', space=vmem, size = 0x10000, scoped, tag = 'output window, operand 0']
    %12 = vsyncpa [#allocation3], 0
    %s13 = scalar_lea.sflag [#allocation3], 1
    %14 = vsyncpa %s13, 0
    %15 = vsyncpa [#allocation6], 0
    %16 = vsyncpa [#allocation9], 0
    %17 = vsyncpa [#allocation4], 0
    %s18 = scalar_lea.sflag [#allocation4], 1
    %19 = vsyncpa %s18, 0
    loop: start=0, step=1, limit=4
    $region2: #{tpu_custom_call.1} parent=1 // loop_pre_header
      _
    $region3: #{tpu_custom_call.1} parent=1 // loop_header
      %s21 = sphi 0, %s25
      %p22 = scmp.ge.s32.totalorder %s21, 4
      %s31 = sphi 0, %s33
      %s34 = sphi 0, %s31
      %s35 = sphi 0, %s34
      %s51 = sphi 0, %s35
      %s55 = sphi 0, %s55
      %s57 = sphi 0, %s55
      %s58 = sphi 0, %s57
      %s72 = sphi 0, %s58
      %s76 = sphi 0, %s76
      %s78 = sphi 0, %s76
      %s79 = sphi 0, %s78
      %s93 = sphi 0, %s79
      %s97 = sphi 0, %s97
      %s99 = sphi 0, %s97
      %s100 = sphi 0, %s99
      %s114 = sphi 0, %s100
      %s118 = sphi 0, %s118
      %s120 = sphi 0, %s118
      %s121 = sphi 0, %s120
      %s135 = sphi 0, %s121
      %s139 = sphi 0, %s139
      %s141 = sphi 0, %s139
      %s142 = sphi 0, %s141
      %s156 = sphi 0, %s142
      %s160 = sphi 0, %s160
      %s162 = sphi 0, %s160
      %s163 = sphi 0, %s162
      %s177 = sphi 0, %s163
      %s183 = sphi 0, %s185
      %s186 = sphi 0, %s183
      %s187 = sphi 0, %s186
      %s203 = sphi 0, %s187
    $region4: #{tpu_custom_call.1} parent=1 // loop_header_branch
      %24 = sbr.rel (%p22) target = $region8
    $region5: #{tpu_custom_call.1} parent=1 // loop_body
      %s26 = ssub.s32 %s21, 1
      %s27 = ssub.s32 %s21, 2
      %s28 = sadd.s32 %s21, 1
      %s29 = ssub.s32 %s21, %s28
      %p30 = scmp.eq.s32.totalorder %s29, 0
      %s32 = sadd.s32 %s31, 1
      %s33 = scalar_select %p30, %s31, %s32
      %p36 = pneg %p30
      %p37 = scmp.eq.s32.totalorder %s21, 1
      %p38 = por %p36, %p37
      %p39 = scmp.ne.s32.totalorder %s31, %s34
      %p40 = scmp.eq.s32.totalorder %s21, 0
      %p41 = por %p39, %p40
      %p42 = scmp.ne.s32.totalorder %s31, %s34
      %p43 = scmp.eq.s32.totalorder %s26, 1
      %p44 = por %p42, %p43
      %p45 = scmp.ne.s32.totalorder %s34, %s35
      %p46 = scmp.eq.s32.totalorder %s26, 0
      %p47 = por %p45, %p46
      %p48 = scmp.ne.s32.totalorder %s34, %s35
      %p49 = scmp.eq.s32.totalorder %s27, 1
      %p50 = por %p48, %p49
      %p52 = scmp.ne.s32.totalorder %s35, %s51
      %p53 = scmp.eq.s32.totalorder %s27, 0
      %p54 = por %p52, %p53
      %s56 = sadd.s32 %s55, 1
      %p59 = scmp.eq.s32.totalorder %s21, 1
      %p60 = scmp.ne.s32.totalorder %s55, %s57
      %p61 = scmp.eq.s32.totalorder %s21, 0
      %p62 = por %p60, %p61
      %p63 = scmp.ne.s32.totalorder %s55, %s57
      %p64 = scmp.eq.s32.totalorder %s26, 1
      %p65 = por %p63, %p64
      %p66 = scmp.ne.s32.totalorder %s57, %s58
      %p67 = scmp.eq.s32.totalorder %s26, 0
      %p68 = por %p66, %p67
      %p69 = scmp.ne.s32.totalorder %s57, %s58
      %p70 = scmp.eq.s32.totalorder %s27, 1
      %p71 = por %p69, %p70
      %p73 = scmp.ne.s32.totalorder %s58, %s72
      %p74 = scmp.eq.s32.totalorder %s27, 0
      %p75 = por %p73, %p74
      %s77 = sadd.s32 %s76, 1
      %p80 = scmp.eq.s32.totalorder %s21, 1
      %p81 = scmp.ne.s32.totalorder %s76, %s78
      %p82 = scmp.eq.s32.totalorder %s21, 0
      %p83 = por %p81, %p82
      %p84 = scmp.ne.s32.totalorder %s76, %s78
      %p85 = scmp.eq.s32.totalorder %s26, 1
      %p86 = por %p84, %p85
      %p87 = scmp.ne.s32.totalorder %s78, %s79
      %p88 = scmp.eq.s32.totalorder %s26, 0
      %p89 = por %p87, %p88
      %p90 = scmp.ne.s32.totalorder %s78, %s79
      %p91 = scmp.eq.s32.totalorder %s27, 1
      %p92 = por %p90, %p91
      %p94 = scmp.ne.s32.totalorder %s79, %s93
      %p95 = scmp.eq.s32.totalorder %s27, 0
      %p96 = por %p94, %p95
      %s98 = sadd.s32 %s97, 1
      %p101 = scmp.eq.s32.totalorder %s21, 1
      %p102 = scmp.ne.s32.totalorder %s97, %s99
      %p103 = scmp.eq.s32.totalorder %s21, 0
      %p104 = por %p102, %p103
      %p105 = scmp.ne.s32.totalorder %s97, %s99
      %p106 = scmp.eq.s32.totalorder %s26, 1
      %p107 = por %p105, %p106
      %p108 = scmp.ne.s32.totalorder %s99, %s100
      %p109 = scmp.eq.s32.totalorder %s26, 0
      %p110 = por %p108, %p109
      %p111 = scmp.ne.s32.totalorder %s99, %s100
      %p112 = scmp.eq.s32.totalorder %s27, 1
      %p113 = por %p111, %p112
      %p115 = scmp.ne.s32.totalorder %s100, %s114
      %p116 = scmp.eq.s32.totalorder %s27, 0
      %p117 = por %p115, %p116
      %s119 = sadd.s32 %s118, 1
      %p122 = scmp.eq.s32.totalorder %s21, 1
      %p123 = scmp.ne.s32.totalorder %s118, %s120
      %p124 = scmp.eq.s32.totalorder %s21, 0
      %p125 = por %p123, %p124
      %p126 = scmp.ne.s32.totalorder %s118, %s120
      %p127 = scmp.eq.s32.totalorder %s26, 1
      %p128 = por %p126, %p127
      %p129 = scmp.ne.s32.totalorder %s120, %s121
      %p130 = scmp.eq.s32.totalorder %s26, 0
      %p131 = por %p129, %p130
      %p132 = scmp.ne.s32.totalorder %s120, %s121
      %p133 = scmp.eq.s32.totalorder %s27, 1
      %p134 = por %p132, %p133
      %p136 = scmp.ne.s32.totalorder %s121, %s135
      %p137 = scmp.eq.s32.totalorder %s27, 0
      %p138 = por %p136, %p137
      %s140 = sadd.s32 %s139, 1
      %p143 = scmp.eq.s32.totalorder %s21, 1
      %p144 = scmp.ne.s32.totalorder %s139, %s141
      %p145 = scmp.eq.s32.totalorder %s21, 0
      %p146 = por %p144, %p145
      %p147 = scmp.ne.s32.totalorder %s139, %s141
      %p148 = scmp.eq.s32.totalorder %s26, 1
      %p149 = por %p147, %p148
      %p150 = scmp.ne.s32.totalorder %s141, %s142
      %p151 = scmp.eq.s32.totalorder %s26, 0
      %p152 = por %p150, %p151
      %p153 = scmp.ne.s32.totalorder %s141, %s142
      %p154 = scmp.eq.s32.totalorder %s27, 1
      %p155 = por %p153, %p154
      %p157 = scmp.ne.s32.totalorder %s142, %s156
      %p158 = scmp.eq.s32.totalorder %s27, 0
      %p159 = por %p157, %p158
      %s161 = sadd.s32 %s160, 1
      %p164 = scmp.eq.s32.totalorder %s21, 1
      %p165 = scmp.ne.s32.totalorder %s160, %s162
      %p166 = scmp.eq.s32.totalorder %s21, 0
      %p167 = por %p165, %p166
      %p168 = scmp.ne.s32.totalorder %s160, %s162
      %p169 = scmp.eq.s32.totalorder %s26, 1
      %p170 = por %p168, %p169
      %p171 = scmp.ne.s32.totalorder %s162, %s163
      %p172 = scmp.eq.s32.totalorder %s26, 0
      %p173 = por %p171, %p172
      %p174 = scmp.ne.s32.totalorder %s162, %s163
      %p175 = scmp.eq.s32.totalorder %s27, 1
      %p176 = por %p174, %p175
      %p178 = scmp.ne.s32.totalorder %s163, %s177
      %p179 = scmp.eq.s32.totalorder %s27, 0
      %p180 = por %p178, %p179
      %s181 = ssub.s32 %s21, %s28
      %p182 = scmp.eq.s32.totalorder %s181, 0
      %s184 = sadd.s32 %s183, 1
      %s185 = scalar_select %p182, %s183, %s184
      %p188 = pneg %p182
      %p189 = scmp.eq.s32.totalorder %s21, 1
      %p190 = por %p188, %p189
      %p191 = scmp.ne.s32.totalorder %s183, %s186
      %p192 = scmp.eq.s32.totalorder %s21, 0
      %p193 = por %p191, %p192
      %p194 = scmp.ne.s32.totalorder %s183, %s186
      %p195 = scmp.eq.s32.totalorder %s26, 1
      %p196 = por %p194, %p195
      %p197 = scmp.ne.s32.totalorder %s186, %s187
      %p198 = scmp.eq.s32.totalorder %s26, 0
      %p199 = por %p197, %p198
      %p200 = scmp.ne.s32.totalorder %s186, %s187
      %p201 = scmp.eq.s32.totalorder %s27, 1
      %p202 = por %p200, %p201
      %p204 = scmp.ne.s32.totalorder %s187, %s203
      %p205 = scmp.eq.s32.totalorder %s27, 0
      %p206 = por %p204, %p205
      %p207 = scmp.le.s32.totalorder 1, %s21
      %p208 = scmp.lt.s32.totalorder %s21, 3
      %p209 = pnand %p207, %p208
      %p210 = pneg %p209
      // Predicated region
      $region9: #{tpu_custom_call.1} parent=5 // pred_check
        _
      $region10: #{tpu_custom_call.1} parent=5 // pred_check_branch
        %212 = sbr.rel (%p209) target = $region12
      $region11: #{tpu_custom_call.1} parent=5 // pred_region
        %s213 = ssub.s32 %s21, 1
        // Predicated region
        $region13: #{tpu_custom_call.1} parent=11 // pred_check
          %p214 = pneg %p68
        $region14: #{tpu_custom_call.1} parent=11 // pred_check_branch
          %216 = sbr.rel (%p214) target = $region16
        $region15: #{tpu_custom_call.1} parent=11 // pred_region
          %218 = vsyncadd [#allocation6], 0
          %s219 = sshll.u32 %s1, 4
          %s220 = int_to_ptr.hbm [resolvable:$true] %s219
          %s221 = sshll.u32 [#allocation5], 4
          %s222 = int_to_ptr.vmem [resolvable:$true] %s221
          %227 = dma.hbm_to_vmem [thread:$0]  %s220, 1024, %s222, [#allocation6], 64, 64, 4
        $region16: #{tpu_custom_call.1} parent=11 // pred_fallthru
          _
        // Predicated region
        $region17: #{tpu_custom_call.1} parent=11 // pred_check
          %p228 = pneg %p89
        $region18: #{tpu_custom_call.1} parent=11 // pred_check_branch
          %230 = sbr.rel (%p228) target = $region20
        $region19: #{tpu_custom_call.1} parent=11 // pred_region
          _
        $region20: #{tpu_custom_call.1} parent=11 // pred_fallthru
          _
        // Predicated region
        $region21: #{tpu_custom_call.1} parent=11 // pred_check
          %p231 = pneg %p110
        $region22: #{tpu_custom_call.1} parent=11 // pred_check_branch
          %233 = sbr.rel (%p231) target = $region24
        $region23: #{tpu_custom_call.1} parent=11 // pred_region
          %235 = vsyncadd [#allocation6], 0
          %s236 = sshll.u32 %s3, 4
          %s237 = int_to_ptr.hbm [resolvable:$true] %s236
          %s238 = sshll.u32 [#allocation7], 4
          %s239 = int_to_ptr.vmem [resolvable:$true] %s238
          %244 = dma.hbm_to_vmem [thread:$0]  %s237, 1024, %s239, [#allocation6], 64, 64, 4
        $region24: #{tpu_custom_call.1} parent=11 // pred_fallthru
          _
        // Predicated region
        $region25: #{tpu_custom_call.1} parent=11 // pred_check
          %p245 = pneg %p131
        $region26: #{tpu_custom_call.1} parent=11 // pred_check_branch
          %247 = sbr.rel (%p245) target = $region28
        $region27: #{tpu_custom_call.1} parent=11 // pred_region
          %249 = vsyncadd [#allocation9], 0
          %s251 = sshll.u32 %s4, 4
          %s252 = int_to_ptr.hbm [resolvable:$true] %s251
          %s253 = sshll.u32 [#allocation8], 4
          %s254 = int_to_ptr.vmem [resolvable:$true] %s253
          %256 = dma.hbm_to_vmem [thread:$0]  %s252, 16, %s254, [#allocation9]
        $region28: #{tpu_custom_call.1} parent=11 // pred_fallthru
          _
        // Predicated region
        $region29: #{tpu_custom_call.1} parent=11 // pred_check
          %p257 = pneg %p152
        $region30: #{tpu_custom_call.1} parent=11 // pred_check_branch
          %259 = sbr.rel (%p257) target = $region32
        $region31: #{tpu_custom_call.1} parent=11 // pred_region
          %261 = vsyncadd [#allocation9], 0
          %s262 = sshll.u32 %s5, 4
          %s263 = int_to_ptr.hbm [resolvable:$true] %s262
          %s264 = sshll.u32 [#allocation10], 4
          %s265 = int_to_ptr.vmem [resolvable:$true] %s264
          %270 = dma.hbm_to_vmem [thread:$0]  %s263, 2048, %s265, [#allocation9], 128, 128, 8
        $region32: #{tpu_custom_call.1} parent=11 // pred_fallthru
          _
        // Predicated region
        $region33: #{tpu_custom_call.1} parent=11 // pred_check
          %p271 = pneg %p173
        $region34: #{tpu_custom_call.1} parent=11 // pred_check_branch
          %273 = sbr.rel (%p271) target = $region36
        $region35: #{tpu_custom_call.1} parent=11 // pred_region
          _
        $region36: #{tpu_custom_call.1} parent=11 // pred_fallthru
          _
      $region12: #{tpu_custom_call.1} parent=5 // pred_fallthru
        _
      %p274 = scmp.lt.s32.totalorder %s21, 2
      // Predicated region
      $region37: #{tpu_custom_call.1} parent=5 // pred_check
        %p275 = pneg %p274
      $region38: #{tpu_custom_call.1} parent=5 // pred_check_branch
        %277 = sbr.rel (%p275) target = $region40
      $region39: #{tpu_custom_call.1} parent=5 // pred_region
        // Predicated region
        $region41: #{tpu_custom_call.1} parent=39 // pred_check
          %p278 = pneg %p41
        $region42: #{tpu_custom_call.1} parent=39 // pred_check_branch
          %280 = sbr.rel (%p278) target = $region44
        $region43: #{tpu_custom_call.1} parent=39 // pred_region
          %s281 = sand.u32 %s31, 1
          %s282 = scalar_lea.sflag [#allocation3], %s281
          %s283 = sand.u32 %s31, 1
          %s284 = smul.addr %s283, 32
          %s285 = scalar_lea.vmem [#allocation2], %s284
          %s286 = smul.u32 4, %s21
          %s287 = ssub.s32 7, %s286
          %p288 = scmp.lt.s32.totalorder %s287, 4
          %s289 = scalar_select %p288, %s287, 4
          %s290 = smul.u32 8, %s289
          %s291 = ssub.s32 32, %s290
          %s292 = sshll.u32 %s291, 4
          %293 = vsyncadd %s282, %s292
          %p294 = scmp.ne.s32.totalorder 0, %s290
          %s295 = smul.addr %s286, 8
          %s296 = scalar_lea.hbm %s0, %s295
          %s297 = smul.u32 8, %s289
          %s298 = sshll.u32 %s296, 4
          %s299 = int_to_ptr.hbm [resolvable:$true] %s298
          %s300 = sshll.u32 %s285, 4
          %s301 = int_to_ptr.vmem [resolvable:$true] %s300
          %s302 = sshll.u32 %s297, 4
          %306 = dma.hbm_to_vmem [thread:$0]  (%p294), %s299, %s302, %s301, %s282, 128, 128, 8
        $region44: #{tpu_custom_call.1} parent=39 // pred_fallthru
          _
      $region40: #{tpu_custom_call.1} parent=5 // pred_fallthru
        _
      %p307 = scmp.le.s32.totalorder 1, %s21
      %p308 = scmp.lt.s32.totalorder %s21, 3
      %p309 = pnand %p307, %p308
      %p310 = pneg %p309
      // Predicated region
      $region45: #{tpu_custom_call.1} parent=5 // pred_check
        _
      $region46: #{tpu_custom_call.1} parent=5 // pred_check_branch
        %312 = sbr.rel (%p309) target = $region48
      $region47: #{tpu_custom_call.1} parent=5 // pred_region
        %s313 = ssub.s32 %s21, 1
        %s314 = sand.u32 %s34, 1
        %s315 = scalar_lea.sflag [#allocation3], %s314
        %s316 = sand.u32 %s34, 1
        %s317 = smul.addr %s316, 32
        %s318 = scalar_lea.vmem [#allocation2], %s317
        // Predicated region
        $region49: #{tpu_custom_call.1} parent=47 // pred_check
          %p319 = pneg %p47
        $region50: #{tpu_custom_call.1} parent=47 // pred_check_branch
          %321 = sbr.rel (%p319) target = $region52
        $region51: #{tpu_custom_call.1} parent=47 // pred_region
          %323 = dma.done %s315, 512
        $region52: #{tpu_custom_call.1} parent=47 // pred_fallthru
          _
        // Predicated region
        $region53: #{tpu_custom_call.1} parent=47 // pred_check
          %p324 = pneg %p68
        $region54: #{tpu_custom_call.1} parent=47 // pred_check_branch
          %326 = sbr.rel (%p324) target = $region56
        $region55: #{tpu_custom_call.1} parent=47 // pred_region
          %328 = dma.done [#allocation6], 1024
        $region56: #{tpu_custom_call.1} parent=47 // pred_fallthru
          _
        // Predicated region
        $region57: #{tpu_custom_call.1} parent=47 // pred_check
          %p329 = pneg %p110
        $region58: #{tpu_custom_call.1} parent=47 // pred_check_branch
          %331 = sbr.rel (%p329) target = $region60
        $region59: #{tpu_custom_call.1} parent=47 // pred_region
          %333 = dma.done [#allocation6], 1024
        $region60: #{tpu_custom_call.1} parent=47 // pred_fallthru
          _
        // Predicated region
        $region61: #{tpu_custom_call.1} parent=47 // pred_check
          %p334 = pneg %p131
        $region62: #{tpu_custom_call.1} parent=47 // pred_check_branch
          %336 = sbr.rel (%p334) target = $region64
        $region63: #{tpu_custom_call.1} parent=47 // pred_region
          %338 = dma.done [#allocation9], 16
        $region64: #{tpu_custom_call.1} parent=47 // pred_fallthru
          _
        // Predicated region
        $region65: #{tpu_custom_call.1} parent=47 // pred_check
          %p339 = pneg %p152
        $region66: #{tpu_custom_call.1} parent=47 // pred_check_branch
          %341 = sbr.rel (%p339) target = $region68
        $region67: #{tpu_custom_call.1} parent=47 // pred_region
          %343 = dma.done [#allocation9], 2048
        $region68: #{tpu_custom_call.1} parent=47 // pred_fallthru
          _
        %s344 = sand.u32 %s34, 1
        %s345 = scalar_lea.sflag [#allocation3], %s344
        %s346 = sand.u32 %s34, 1
        %s347 = smul.addr %s346, 32
        %s348 = scalar_lea.vmem [#allocation2], %s347
        %p349 = pneg %p47
        %p350 = pneg %p44
        %p351 = pneg %p68
        %p352 = pneg %p65
        %p353 = pneg %p89
        %p354 = pneg %p86
        %p355 = pneg %p110
        %p356 = pneg %p107
        %p357 = pneg %p131
        %p358 = pneg %p128
        %p359 = pneg %p152
        %p360 = pneg %p149
        %p361 = pneg %p173
        %p362 = pneg %p170
        %p363 = pneg %p199
        %p364 = pneg %p196
        %s365 = sand.u32 %s186, 1
        %s366 = scalar_lea.sflag [#allocation4], %s365
        %s367 = sand.u32 %s186, 1
        %s368 = smul.addr %s367, 64
        %s369 = scalar_lea.vmem [#allocation11], %s368
        %s370 = smul.u32 4, %s26
        %s371 = ssub.s32 7, %s370
        %p372 = scmp.lt.s32.totalorder %s371, 4
        %s373 = scalar_select %p372, %s371, 4
        %s374 = smul.u32 8, %s373
        %s375 = smul.u32 4, %s26
        %s376 = ssub.s32 7, %s375
        %p377 = scmp.lt.s32.totalorder %s376, 4
        %s378 = scalar_select %p377, %s376, 4
        %s379 = smul.u32 8, %s378
        %s380 = smul.u32 %s379, 2
        %v381 = vld [vmem:[%s318] sm:$0xff]
        %v382 = vld [vmem:[%s318 + $0x8] sm:$0xff]
        %v383 = vld [vmem:[%s318 + $0x10] sm:$0xff]
        %v384 = vld [vmem:[%s318 + $0x18] sm:$0xff]
        %v385 = vpack.c.bf16 %v382, %v381
        %v386 = vpack.c.bf16 %v384, %v383
        %v387 = vld [vmem:[#allocation5] sm:$0xf]
        %v388 = vld [vmem:[#allocation5 + $0x4] sm:$0xf]
        %v389 = vld [vmem:[#allocation5 + $0x8] sm:$0xf]
        %v390 = vld [vmem:[#allocation5 + $0xc] sm:$0xf]
        %v391 = vld [vmem:[#allocation5 + $0x10] sm:$0xf]
        %v392 = vld [vmem:[#allocation5 + $0x14] sm:$0xf]
        %v393 = vld [vmem:[#allocation5 + $0x18] sm:$0xf]
        %v394 = vld [vmem:[#allocation5 + $0x1c] sm:$0xf]
        %v395 = vld [vmem:[#allocation5 + $0x20] sm:$0xf]
        %v396 = vld [vmem:[#allocation5 + $0x24] sm:$0xf]
        %v397 = vld [vmem:[#allocation5 + $0x28] sm:$0xf]
        %v398 = vld [vmem:[#allocation5 + $0x2c] sm:$0xf]
        %v399 = vld [vmem:[#allocation5 + $0x30] sm:$0xf]
        %v400 = vld [vmem:[#allocation5 + $0x34] sm:$0xf]
        %v401 = vld [vmem:[#allocation5 + $0x38] sm:$0xf]
        %v402 = vld [vmem:[#allocation5 + $0x3c] sm:$0xf]
        %v403 = vld [vmem:[%s2] sm:$0x1]
        %v405 = vperm.slane %v403, 0
        %v423 = vunpack.c.l.b16 %v387
        %v424 = vunpack.c.l.b16 %v388
        %v425 = vunpack.c.l.b16 %v389
        %v426 = vunpack.c.l.b16 %v390
        %v427 = vunpack.c.l.b16 %v391
        %v428 = vunpack.c.l.b16 %v392
        %v429 = vunpack.c.l.b16 %v393
        %v430 = vunpack.c.l.b16 %v394
        %v431 = vunpack.c.l.b16 %v395
        %v432 = vunpack.c.l.b16 %v396
        %v433 = vunpack.c.l.b16 %v397
        %v434 = vunpack.c.l.b16 %v398
        %v435 = vunpack.c.l.b16 %v399
        %v436 = vunpack.c.l.b16 %v400
        %v437 = vunpack.c.l.b16 %v401
        %v438 = vunpack.c.l.b16 %v402
        %v439 = vpack.c.b16 %v424, %v423
        %v440 = vpack.c.b16 %v426, %v425
        %v441 = vpack.c.b16 %v428, %v427
        %v442 = vpack.c.b16 %v430, %v429
        %v443 = vpack.c.b16 %v432, %v431
        %v444 = vpack.c.b16 %v434, %v433
        %v445 = vpack.c.b16 %v436, %v435
        %v446 = vpack.c.b16 %v438, %v437
        %455 = vmatpush.bf16.msra.mxu0 %v446
        %456 = vmatpush.bf16.msra.mxu0 %v445
        %457 = vmatpush.bf16.msra.mxu0 %v444
        %458 = vmatpush.bf16.msra.mxu0 %v443
        %459 = vmatpush.bf16.msra.mxu0 %v442
        %460 = vmatpush.bf16.msra.mxu0 %v441
        %461 = vmatpush.bf16.msra.mxu0 %v440
        %462 = vmatpush.bf16.msra.mxu0 %v439
        %463 = vmatmul.bf16.gmra.mxu0 %v385
        %v464 = vpop.f32.mrf.mxu0
        %v465 = vadd.f32 %v405, %v464
        %v466 = vpop.f32.mrf.mxu0
        %v467 = vadd.f32 %v405, %v466
        %468 = vmatmul.bf16.gmra.mxu0 %v386
        %v469 = vpop.f32.mrf.mxu0
        %v470 = vadd.f32 %v405, %v469
        %v471 = vpop.f32.mrf.mxu0
        %v472 = vadd.f32 %v405, %v471
        %473 = vdwg.mxu0
        %v474 = vmul.f32 %v465, 0.2
        %v475 = vmul.f32 %v467, 0.2
        %v476 = vmul.f32 %v470, 0.2
        %v477 = vmul.f32 %v472, 0.2
        %v478 = vmax.f32 %v465, %v474
        %v479 = vmax.f32 %v467, %v475
        %v480 = vmax.f32 %v470, %v476
        %v481 = vmax.f32 %v472, %v477
        %v482 = vpack.c.bf16 %v479, %v478
        %v483 = vpack.c.bf16 %v481, %v480
        %v484 = vld [vmem:[#allocation7] sm:$0xf]
        %v485 = vld [vmem:[#allocation7 + $0x4] sm:$0xf]
        %v486 = vld [vmem:[#allocation7 + $0x8] sm:$0xf]
        %v487 = vld [vmem:[#allocation7 + $0xc] sm:$0xf]
        %v488 = vld [vmem:[#allocation7 + $0x10] sm:$0xf]
        %v489 = vld [vmem:[#allocation7 + $0x14] sm:$0xf]
        %v490 = vld [vmem:[#allocation7 + $0x18] sm:$0xf]
        %v491 = vld [vmem:[#allocation7 + $0x1c] sm:$0xf]
        %v492 = vld [vmem:[#allocation7 + $0x20] sm:$0xf]
        %v493 = vld [vmem:[#allocation7 + $0x24] sm:$0xf]
        %v494 = vld [vmem:[#allocation7 + $0x28] sm:$0xf]
        %v495 = vld [vmem:[#allocation7 + $0x2c] sm:$0xf]
        %v496 = vld [vmem:[#allocation7 + $0x30] sm:$0xf]
        %v497 = vld [vmem:[#allocation7 + $0x34] sm:$0xf]
        %v498 = vld [vmem:[#allocation7 + $0x38] sm:$0xf]
        %v499 = vld [vmem:[#allocation7 + $0x3c] sm:$0xf]
        %v500 = vld [vmem:[#allocation8] sm:$0x1]
        %v502 = vperm.slane %v500, 0
        %v520 = vunpack.c.l.b16 %v484
        %v521 = vunpack.c.l.b16 %v485
        %v522 = vunpack.c.l.b16 %v486
        %v523 = vunpack.c.l.b16 %v487
        %v524 = vunpack.c.l.b16 %v488
        %v525 = vunpack.c.l.b16 %v489
        %v526 = vunpack.c.l.b16 %v490
        %v527 = vunpack.c.l.b16 %v491
        %v528 = vunpack.c.l.b16 %v492
        %v529 = vunpack.c.l.b16 %v493
        %v530 = vunpack.c.l.b16 %v494
        %v531 = vunpack.c.l.b16 %v495
        %v532 = vunpack.c.l.b16 %v496
        %v533 = vunpack.c.l.b16 %v497
        %v534 = vunpack.c.l.b16 %v498
        %v535 = vunpack.c.l.b16 %v499
        %v536 = vpack.c.b16 %v521, %v520
        %v537 = vpack.c.b16 %v523, %v522
        %v538 = vpack.c.b16 %v525, %v524
        %v539 = vpack.c.b16 %v527, %v526
        %v540 = vpack.c.b16 %v529, %v528
        %v541 = vpack.c.b16 %v531, %v530
        %v542 = vpack.c.b16 %v533, %v532
        %v543 = vpack.c.b16 %v535, %v534
        %552 = vmatpush.bf16.msra.mxu0 %v543
        %553 = vmatpush.bf16.msra.mxu0 %v542
        %554 = vmatpush.bf16.msra.mxu0 %v541
        %555 = vmatpush.bf16.msra.mxu0 %v540
        %556 = vmatpush.bf16.msra.mxu0 %v539
        %557 = vmatpush.bf16.msra.mxu0 %v538
        %558 = vmatpush.bf16.msra.mxu0 %v537
        %559 = vmatpush.bf16.msra.mxu0 %v536
        %560 = vmatmul.bf16.gmra.mxu0 %v482
        %v561 = vpop.f32.mrf.mxu0
        %v562 = vadd.f32 %v502, %v561
        %v563 = vpop.f32.mrf.mxu0
        %v564 = vadd.f32 %v502, %v563
        %565 = vmatmul.bf16.gmra.mxu0 %v483
        %v566 = vpop.f32.mrf.mxu0
        %v567 = vadd.f32 %v502, %v566
        %v568 = vpop.f32.mrf.mxu0
        %v569 = vadd.f32 %v502, %v568
        %570 = vdwg.mxu0
        %v571 = vmul.f32 %v562, 0.2
        %v572 = vmul.f32 %v564, 0.2
        %v573 = vmul.f32 %v567, 0.2
        %v574 = vmul.f32 %v569, 0.2
        %v575 = vmax.f32 %v562, %v571
        %v576 = vmax.f32 %v564, %v572
        %v577 = vmax.f32 %v567, %v573
        %v578 = vmax.f32 %v569, %v574
        %v579 = vpack.c.bf16 %v576, %v575
        %v580 = vpack.c.bf16 %v578, %v577
        %v581 = vld [vmem:[#allocation10] sm:$0xff]
        %v582 = vld [vmem:[#allocation10 + $0x8] sm:$0xff]
        %v583 = vld [vmem:[#allocation10 + $0x10] sm:$0xff]
        %v584 = vld [vmem:[#allocation10 + $0x18] sm:$0xff]
        %v585 = vld [vmem:[#allocation10 + $0x20] sm:$0xff]
        %v586 = vld [vmem:[#allocation10 + $0x28] sm:$0xff]
        %v587 = vld [vmem:[#allocation10 + $0x30] sm:$0xff]
        %v588 = vld [vmem:[#allocation10 + $0x38] sm:$0xff]
        %v589 = vld [vmem:[#allocation10 + $0x40] sm:$0xff]
        %v590 = vld [vmem:[#allocation10 + $0x48] sm:$0xff]
        %v591 = vld [vmem:[#allocation10 + $0x50] sm:$0xff]
        %v592 = vld [vmem:[#allocation10 + $0x58] sm:$0xff]
        %v593 = vld [vmem:[#allocation10 + $0x60] sm:$0xff]
        %v594 = vld [vmem:[#allocation10 + $0x68] sm:$0xff]
        %v595 = vld [vmem:[#allocation10 + $0x70] sm:$0xff]
        %v596 = vld [vmem:[#allocation10 + $0x78] sm:$0xff]
        %v597 = vld [vmem:[%s6] sm:$0x3]
        %v599 = vperm.slane %v597, 0
        %v600 = vperm.slane %v597, 1
        %v619 = vunpack.c.l.b16 %v581
        %v620 = vunpack.c.h.b16 %v581
        %v621 = vunpack.c.l.b16 %v582
        %v622 = vunpack.c.h.b16 %v582
        %v623 = vunpack.c.l.b16 %v583
        %v624 = vunpack.c.h.b16 %v583
        %v625 = vunpack.c.l.b16 %v584
        %v626 = vunpack.c.h.b16 %v584
        %v627 = vunpack.c.l.b16 %v585
        %v628 = vunpack.c.h.b16 %v585
        %v629 = vunpack.c.l.b16 %v586
        %v630 = vunpack.c.h.b16 %v586
        %v631 = vunpack.c.l.b16 %v587
        %v632 = vunpack.c.h.b16 %v587
        %v633 = vunpack.c.l.b16 %v588
        %v634 = vunpack.c.h.b16 %v588
        %v635 = vunpack.c.l.b16 %v589
        %v636 = vunpack.c.h.b16 %v589
        %v637 = vunpack.c.l.b16 %v590
        %v638 = vunpack.c.h.b16 %v590
        %v639 = vunpack.c.l.b16 %v591
        %v640 = vunpack.c.h.b16 %v591
        %v641 = vunpack.c.l.b16 %v592
        %v642 = vunpack.c.h.b16 %v592
        %v643 = vunpack.c.l.b16 %v593
        %v644 = vunpack.c.h.b16 %v593
        %v645 = vunpack.c.l.b16 %v594
        %v646 = vunpack.c.h.b16 %v594
        %v647 = vunpack.c.l.b16 %v595
        %v648 = vunpack.c.h.b16 %v595
        %v649 = vunpack.c.l.b16 %v596
        %v650 = vunpack.c.h.b16 %v596
        %v651 = vpack.c.b16 %v621, %v619
        %v652 = vpack.c.b16 %v622, %v620
        %v653 = vpack.c.b16 %v625, %v623
        %v654 = vpack.c.b16 %v626, %v624
        %v655 = vpack.c.b16 %v629, %v627
        %v656 = vpack.c.b16 %v630, %v628
        %v657 = vpack.c.b16 %v633, %v631
        %v658 = vpack.c.b16 %v634, %v632
        %v659 = vpack.c.b16 %v637, %v635
        %v660 = vpack.c.b16 %v638, %v636
        %v661 = vpack.c.b16 %v641, %v639
        %v662 = vpack.c.b16 %v642, %v640
        %v663 = vpack.c.b16 %v645, %v643
        %v664 = vpack.c.b16 %v646, %v644
        %v665 = vpack.c.b16 %v649, %v647
        %v666 = vpack.c.b16 %v650, %v648
        %683 = vmatpush.bf16.msra.mxu0 %v665
        %684 = vmatpush.bf16.msra.mxu0 %v663
        %685 = vmatpush.bf16.msra.mxu0 %v661
        %686 = vmatpush.bf16.msra.mxu0 %v659
        %687 = vmatpush.bf16.msra.mxu0 %v657
        %688 = vmatpush.bf16.msra.mxu0 %v655
        %689 = vmatpush.bf16.msra.mxu0 %v653
        %690 = vmatpush.bf16.msra.mxu0 %v651
        %691 = vmatmul.bf16.gmra.mxu0 %v579
        %v692 = vpop.f32.mrf.mxu0
        %v693 = vadd.f32 %v599, %v692
        %v694 = vpop.f32.mrf.mxu0
        %v695 = vadd.f32 %v599, %v694
        %696 = vmatmul.bf16.gmra.mxu0 %v580
        %v697 = vpop.f32.mrf.mxu0
        %v698 = vadd.f32 %v599, %v697
        %v699 = vpop.f32.mrf.mxu0
        %v700 = vadd.f32 %v599, %v699
        %701 = vdwg.mxu0
        %702 = vmatpush.bf16.msra.mxu0 %v666
        %703 = vmatpush.bf16.msra.mxu0 %v664
        %704 = vmatpush.bf16.msra.mxu0 %v662
        %705 = vmatpush.bf16.msra.mxu0 %v660
        %706 = vmatpush.bf16.msra.mxu0 %v658
        %707 = vmatpush.bf16.msra.mxu0 %v656
        %708 = vmatpush.bf16.msra.mxu0 %v654
        %709 = vmatpush.bf16.msra.mxu0 %v652
        %710 = vmatmul.bf16.gmra.mxu0 %v579
        %v711 = vpop.f32.mrf.mxu0
        %v712 = vadd.f32 %v600, %v711
        %v713 = vpop.f32.mrf.mxu0
        %v714 = vadd.f32 %v600, %v713
        %715 = vmatmul.bf16.gmra.mxu0 %v580
        %v716 = vpop.f32.mrf.mxu0
        %v717 = vadd.f32 %v600, %v716
        %v718 = vpop.f32.mrf.mxu0
        %v719 = vadd.f32 %v600, %v718
        %720 = vdwg.mxu0
        %721 = vst [vmem:[%s369] sm:$0xff] %v693
        %722 = vst [vmem:[%s369 + $0x8] sm:$0xff] %v712
        %723 = vst [vmem:[%s369 + $0x10] sm:$0xff] %v695
        %724 = vst [vmem:[%s369 + $0x18] sm:$0xff] %v714
        %725 = vst [vmem:[%s369 + $0x20] sm:$0xff] %v698
        %726 = vst [vmem:[%s369 + $0x28] sm:$0xff] %v717
        %727 = vst [vmem:[%s369 + $0x30] sm:$0xff] %v700
        %728 = vst [vmem:[%s369 + $0x38] sm:$0xff] %v719
        %s729 = sand.u32 %s186, 1
        %s730 = scalar_lea.sflag [#allocation4], %s729
        %s731 = sand.u32 %s186, 1
        %s732 = smul.addr %s731, 64
        %s733 = scalar_lea.vmem [#allocation11], %s732
        // Predicated region
        $region69: #{tpu_custom_call.1} parent=47 // pred_check
          %p734 = pneg %p196
        $region70: #{tpu_custom_call.1} parent=47 // pred_check_branch
          %736 = sbr.rel (%p734) target = $region72
        $region71: #{tpu_custom_call.1} parent=47 // pred_region
          %s737 = smul.u32 4, %s26
          %s738 = ssub.s32 7, %s737
          %p739 = scmp.lt.s32.totalorder %s738, 4
          %s740 = scalar_select %p739, %s738, 4
          %s741 = smul.u32 8, %s740
          %s742 = smul.u32 %s741, 2
          %s743 = ssub.s32 64, %s742
          %s744 = sshll.u32 %s743, 4
          %745 = vsyncadd %s730, %s744
          %p746 = scmp.ne.s32.totalorder 0, %s742
          %s747 = smul.addr %s737, 2
          %s748 = smul.addr %s747, 8
          %s749 = scalar_lea.hbm %s7, %s748
          %s750 = smul.u32 16, %s740
          %s751 = sshll.u32 %s733, 4
          %s752 = int_to_ptr.vmem [resolvable:$true] %s751
          %s753 = sshll.u32 %s749, 4
          %s754 = int_to_ptr.hbm [resolvable:$true] %s753
          %s755 = sshll.u32 %s750, 4
          %759 = dma.vmem_to_hbm [thread:$0]  (%p746), %s752, %s755, %s754, %s730, 256, 256, 16
        $region72: #{tpu_custom_call.1} parent=47 // pred_fallthru
          _
      $region48: #{tpu_custom_call.1} parent=5 // pred_fallthru
        _
      %p760 = scmp.le.s32.totalorder 2, %s21
      // Predicated region
      $region73: #{tpu_custom_call.1} parent=5 // pred_check
        %p761 = pneg %p760
      $region74: #{tpu_custom_call.1} parent=5 // pred_check_branch
        %763 = sbr.rel (%p761) target = $region76
      $region75: #{tpu_custom_call.1} parent=5 // pred_region
        %s764 = ssub.s32 %s21, 2
        // Predicated region
        $region77: #{tpu_custom_call.1} parent=75 // pred_check
          %p765 = pneg %p202
        $region78: #{tpu_custom_call.1} parent=75 // pred_check_branch
          %767 = sbr.rel (%p765) target = $region80
        $region79: #{tpu_custom_call.1} parent=75 // pred_region
          %s768 = sand.u32 %s187, 1
          %s769 = scalar_lea.sflag [#allocation4], %s768
          %s770 = sand.u32 %s187, 1
          %s771 = smul.addr %s770, 64
          %s772 = scalar_lea.vmem [#allocation11], %s771
          %774 = dma.done %s769, 1024
        $region80: #{tpu_custom_call.1} parent=75 // pred_fallthru
          _
      $region76: #{tpu_custom_call.1} parent=5 // pred_fallthru
        _
    $region6: #{tpu_custom_call.1} parent=1 // loop_footer
      %s25 = sadd.s32 1, %s21
    $region7: #{tpu_custom_call.1} parent=1 // loop_footer_branch
      %20 = sbr.rel target = $region3
    $region8: #{tpu_custom_call.1} parent=1 // loop_exit
      _
    %775 = vsyncpa [#allocation3], 1
    %s776 = scalar_lea.sflag [#allocation3], 1
    %777 = vsyncpa %s776, 1
    %778 = vsyncpa [#allocation6], 1
    %779 = vsyncpa [#allocation9], 1
    %780 = vsyncpa [#allocation4], 1
    %s781 = scalar_lea.sflag [#allocation4], 1
    %782 = vsyncpa %s781, 1

// kernel: tpu_custom_call.1
$region0: #{tpu_custom_call.1}
  #allocation0 [shape = 'u32[]', space=smem, size = 0x4, offset = 0x4, fixed_abs, tag = 'smem constant byte address 0x4 - core index']
  #allocation1 [shape = 'u32[72,128]{1,0:T(1,128)}', space=vmem, size = 0x9000, scoped, tag = 'internal scratch']
  %s0 = inlined_call_operand.hbm [shape: f32[50,128], index: 0, kind: input, shape index: {}]
  %s1 = inlined_call_operand.hbm [shape: bf16[128,128], index: 1, kind: input, shape index: {}]
  %s2 = inlined_call_operand.vmem [shape: f32[1,128], index: 2, kind: input, shape index: {}]
  %s3 = inlined_call_operand.hbm [shape: bf16[128,128], index: 3, kind: input, shape index: {}]
  %s4 = inlined_call_operand.hbm [shape: f32[1,128], index: 4, kind: input, shape index: {}]
  %s5 = inlined_call_operand.hbm [shape: bf16[128,256], index: 5, kind: input, shape index: {}]
  %s6 = inlined_call_operand.vmem [shape: f32[1,256], index: 6, kind: input, shape index: {}]
  %s7 = inlined_call_operand.hbm [shape: f32[50,256], index: 7, kind: output, shape index: {}]
  %s8 = sld [smem:[#allocation0]]
  $region81: #{tpu_custom_call.1} parent=0
    _
  %s10 = ssub.s32 1, %s8
  %s11 = scalar_select 0, %s10, %s8
  $region1: #{tpu_custom_call.1} parent=0
    #allocation2 [shape = 'u8[32768]{0}', space=vmem, size = 0x8000, scoped, tag = 'input window, operand 0']
    #allocation3 [shape = 's32[2]{0}', space=sflag, size = 0x8, scoped, tag = 'scoped memory for tpu_custom_call.1']
    #allocation4 [shape = 's32[2]{0}', space=sflag, size = 0x8, scoped, tag = 'scoped memory for tpu_custom_call.1']
    #allocation5 [shape = 'u8[32768]{0}', space=vmem, size = 0x8000, scoped, tag = 'input window, operand 1, single buffered']
    #allocation6 [shape = 's32[1]{0}', space=sflag, size = 0x4, scoped, tag = 'scoped memory for tpu_custom_call.1']
    #allocation7 [shape = 'u8[32768]{0}', space=vmem, size = 0x8000, scoped, tag = 'input window, operand 3, single buffered']
    #allocation8 [shape = 'u8[512]{0}', space=vmem, size = 0x400, scoped, tag = 'input window, operand 4, single buffered']
    #allocation9 [shape = 's32[1]{0}', space=sflag, size = 0x4, scoped, tag = 'scoped memory for tpu_custom_call.1']
    #allocation10 [shape = 'u8[65536]{0}', space=vmem, size = 0x10000, scoped, tag = 'input window, operand 5, single buffered']
    #allocation11 [shape = 'u8[65536]{0}', space=vmem, size = 0x10000, scoped, tag = 'output window, operand 0']
    %12 = vsyncpa [#allocation3], 0
    %s13 = scalar_lea.sflag [#allocation3], 1
    %14 = vsyncpa %s13, 0
    %15 = vsyncpa [#allocation6], 0
    %16 = vsyncpa [#allocation9], 0
    %17 = vsyncpa [#allocation4], 0
    %s18 = scalar_lea.sflag [#allocation4], 1
    %19 = vsyncpa %s18, 0
    loop: start=0, step=1, limit=4
    $region2: #{tpu_custom_call.1} parent=1 // loop_pre_header
      _
    $region3: #{tpu_custom_call.1} parent=1 // loop_header
      %s21 = sphi 0, %s25
      %p22 = scmp.ge.s32.totalorder %s21, 4
      %s31 = sphi 0, %s33
      %s34 = sphi 0, %s31
      %s35 = sphi 0, %s34
      %s51 = sphi 0, %s35
      %s55 = sphi 0, %s55
      %s57 = sphi 0, %s55
      %s58 = sphi 0, %s57
      %s72 = sphi 0, %s58
      %s76 = sphi 0, %s76
      %s78 = sphi 0, %s76
      %s79 = sphi 0, %s78
      %s93 = sphi 0, %s79
      %s97 = sphi 0, %s97
      %s99 = sphi 0, %s97
      %s100 = sphi 0, %s99
      %s114 = sphi 0, %s100
      %s118 = sphi 0, %s118
      %s120 = sphi 0, %s118
      %s121 = sphi 0, %s120
      %s135 = sphi 0, %s121
      %s139 = sphi 0, %s139
      %s141 = sphi 0, %s139
      %s142 = sphi 0, %s141
      %s156 = sphi 0, %s142
      %s160 = sphi 0, %s160
      %s162 = sphi 0, %s160
      %s163 = sphi 0, %s162
      %s177 = sphi 0, %s163
      %s183 = sphi 0, %s185
      %s186 = sphi 0, %s183
      %s187 = sphi 0, %s186
      %s203 = sphi 0, %s187
    $region4: #{tpu_custom_call.1} parent=1 // loop_header_branch
      %24 = sbr.rel (%p22) target = $region8
    $region5: #{tpu_custom_call.1} parent=1 // loop_body
      %s26 = ssub.s32 %s21, 1
      %s27 = ssub.s32 %s21, 2
      %s28 = sadd.s32 %s21, 1
      %s29 = ssub.s32 %s21, %s28
      %p30 = scmp.eq.s32.totalorder %s29, 0
      %s32 = sadd.s32 %s31, 1
      %s33 = scalar_select %p30, %s31, %s32
      %p36 = pneg %p30
      %p37 = scmp.eq.s32.totalorder %s21, 1
      %p38 = por %p36, %p37
      %p39 = scmp.ne.s32.totalorder %s31, %s34
      %p40 = scmp.eq.s32.totalorder %s21, 0
      %p41 = por %p39, %p40
      %p42 = scmp.ne.s32.totalorder %s31, %s34
      %p43 = scmp.eq.s32.totalorder %s26, 1
      %p44 = por %p42, %p43
      %p45 = scmp.ne.s32.totalorder %s34, %s35
      %p46 = scmp.eq.s32.totalorder %s26, 0
      %p47 = por %p45, %p46
      %p48 = scmp.ne.s32.totalorder %s34, %s35
      %p49 = scmp.eq.s32.totalorder %s27, 1
      %p50 = por %p48, %p49
      %p52 = scmp.ne.s32.totalorder %s35, %s51
      %p53 = scmp.eq.s32.totalorder %s27, 0
      %p54 = por %p52, %p53
      %s56 = sadd.s32 %s55, 1
      %p59 = scmp.eq.s32.totalorder %s21, 1
      %p60 = scmp.ne.s32.totalorder %s55, %s57
      %p61 = scmp.eq.s32.totalorder %s21, 0
      %p62 = por %p60, %p61
      %p63 = scmp.ne.s32.totalorder %s55, %s57
      %p64 = scmp.eq.s32.totalorder %s26, 1
      %p65 = por %p63, %p64
      %p66 = scmp.ne.s32.totalorder %s57, %s58
      %p67 = scmp.eq.s32.totalorder %s26, 0
      %p68 = por %p66, %p67
      %p69 = scmp.ne.s32.totalorder %s57, %s58
      %p70 = scmp.eq.s32.totalorder %s27, 1
      %p71 = por %p69, %p70
      %p73 = scmp.ne.s32.totalorder %s58, %s72
      %p74 = scmp.eq.s32.totalorder %s27, 0
      %p75 = por %p73, %p74
      %s77 = sadd.s32 %s76, 1
      %p80 = scmp.eq.s32.totalorder %s21, 1
      %p81 = scmp.ne.s32.totalorder %s76, %s78
      %p82 = scmp.eq.s32.totalorder %s21, 0
      %p83 = por %p81, %p82
      %p84 = scmp.ne.s32.totalorder %s76, %s78
      %p85 = scmp.eq.s32.totalorder %s26, 1
      %p86 = por %p84, %p85
      %p87 = scmp.ne.s32.totalorder %s78, %s79
      %p88 = scmp.eq.s32.totalorder %s26, 0
      %p89 = por %p87, %p88
      %p90 = scmp.ne.s32.totalorder %s78, %s79
      %p91 = scmp.eq.s32.totalorder %s27, 1
      %p92 = por %p90, %p91
      %p94 = scmp.ne.s32.totalorder %s79, %s93
      %p95 = scmp.eq.s32.totalorder %s27, 0
      %p96 = por %p94, %p95
      %s98 = sadd.s32 %s97, 1
      %p101 = scmp.eq.s32.totalorder %s21, 1
      %p102 = scmp.ne.s32.totalorder %s97, %s99
      %p103 = scmp.eq.s32.totalorder %s21, 0
      %p104 = por %p102, %p103
      %p105 = scmp.ne.s32.totalorder %s97, %s99
      %p106 = scmp.eq.s32.totalorder %s26, 1
      %p107 = por %p105, %p106
      %p108 = scmp.ne.s32.totalorder %s99, %s100
      %p109 = scmp.eq.s32.totalorder %s26, 0
      %p110 = por %p108, %p109
      %p111 = scmp.ne.s32.totalorder %s99, %s100
      %p112 = scmp.eq.s32.totalorder %s27, 1
      %p113 = por %p111, %p112
      %p115 = scmp.ne.s32.totalorder %s100, %s114
      %p116 = scmp.eq.s32.totalorder %s27, 0
      %p117 = por %p115, %p116
      %s119 = sadd.s32 %s118, 1
      %p122 = scmp.eq.s32.totalorder %s21, 1
      %p123 = scmp.ne.s32.totalorder %s118, %s120
      %p124 = scmp.eq.s32.totalorder %s21, 0
      %p125 = por %p123, %p124
      %p126 = scmp.ne.s32.totalorder %s118, %s120
      %p127 = scmp.eq.s32.totalorder %s26, 1
      %p128 = por %p126, %p127
      %p129 = scmp.ne.s32.totalorder %s120, %s121
      %p130 = scmp.eq.s32.totalorder %s26, 0
      %p131 = por %p129, %p130
      %p132 = scmp.ne.s32.totalorder %s120, %s121
      %p133 = scmp.eq.s32.totalorder %s27, 1
      %p134 = por %p132, %p133
      %p136 = scmp.ne.s32.totalorder %s121, %s135
      %p137 = scmp.eq.s32.totalorder %s27, 0
      %p138 = por %p136, %p137
      %s140 = sadd.s32 %s139, 1
      %p143 = scmp.eq.s32.totalorder %s21, 1
      %p144 = scmp.ne.s32.totalorder %s139, %s141
      %p145 = scmp.eq.s32.totalorder %s21, 0
      %p146 = por %p144, %p145
      %p147 = scmp.ne.s32.totalorder %s139, %s141
      %p148 = scmp.eq.s32.totalorder %s26, 1
      %p149 = por %p147, %p148
      %p150 = scmp.ne.s32.totalorder %s141, %s142
      %p151 = scmp.eq.s32.totalorder %s26, 0
      %p152 = por %p150, %p151
      %p153 = scmp.ne.s32.totalorder %s141, %s142
      %p154 = scmp.eq.s32.totalorder %s27, 1
      %p155 = por %p153, %p154
      %p157 = scmp.ne.s32.totalorder %s142, %s156
      %p158 = scmp.eq.s32.totalorder %s27, 0
      %p159 = por %p157, %p158
      %s161 = sadd.s32 %s160, 1
      %p164 = scmp.eq.s32.totalorder %s21, 1
      %p165 = scmp.ne.s32.totalorder %s160, %s162
      %p166 = scmp.eq.s32.totalorder %s21, 0
      %p167 = por %p165, %p166
      %p168 = scmp.ne.s32.totalorder %s160, %s162
      %p169 = scmp.eq.s32.totalorder %s26, 1
      %p170 = por %p168, %p169
      %p171 = scmp.ne.s32.totalorder %s162, %s163
      %p172 = scmp.eq.s32.totalorder %s26, 0
      %p173 = por %p171, %p172
      %p174 = scmp.ne.s32.totalorder %s162, %s163
      %p175 = scmp.eq.s32.totalorder %s27, 1
      %p176 = por %p174, %p175
      %p178 = scmp.ne.s32.totalorder %s163, %s177
      %p179 = scmp.eq.s32.totalorder %s27, 0
      %p180 = por %p178, %p179
      %s181 = ssub.s32 %s21, %s28
      %p182 = scmp.eq.s32.totalorder %s181, 0
      %s184 = sadd.s32 %s183, 1
      %s185 = scalar_select %p182, %s183, %s184
      %p188 = pneg %p182
      %p189 = scmp.eq.s32.totalorder %s21, 1
      %p190 = por %p188, %p189
      %p191 = scmp.ne.s32.totalorder %s183, %s186
      %p192 = scmp.eq.s32.totalorder %s21, 0
      %p193 = por %p191, %p192
      %p194 = scmp.ne.s32.totalorder %s183, %s186
      %p195 = scmp.eq.s32.totalorder %s26, 1
      %p196 = por %p194, %p195
      %p197 = scmp.ne.s32.totalorder %s186, %s187
      %p198 = scmp.eq.s32.totalorder %s26, 0
      %p199 = por %p197, %p198
      %p200 = scmp.ne.s32.totalorder %s186, %s187
      %p201 = scmp.eq.s32.totalorder %s27, 1
      %p202 = por %p200, %p201
      %p204 = scmp.ne.s32.totalorder %s187, %s203
      %p205 = scmp.eq.s32.totalorder %s27, 0
      %p206 = por %p204, %p205
      %p207 = scmp.le.s32.totalorder 1, %s21
      %p208 = scmp.lt.s32.totalorder %s21, 3
      %p209 = pnand %p207, %p208
      %p210 = pneg %p209
      // Predicated region
      $region9: #{tpu_custom_call.1} parent=5 // pred_check
        _
      $region10: #{tpu_custom_call.1} parent=5 // pred_check_branch
        %212 = sbr.rel (%p209) target = $region12
      $region11: #{tpu_custom_call.1} parent=5 // pred_region
        %s213 = ssub.s32 %s21, 1
        // Predicated region
        $region13: #{tpu_custom_call.1} parent=11 // pred_check
          %p214 = pneg %p68
        $region14: #{tpu_custom_call.1} parent=11 // pred_check_branch
          %216 = sbr.rel (%p214) target = $region16
        $region15: #{tpu_custom_call.1} parent=11 // pred_region
          %218 = vsyncadd [#allocation6], 0
          %s219 = sshll.u32 %s1, 4
          %s220 = int_to_ptr.hbm [resolvable:$true] %s219
          %s221 = sshll.u32 [#allocation5], 4
          %s222 = int_to_ptr.vmem [resolvable:$true] %s221
          %227 = dma.hbm_to_vmem [thread:$0]  %s220, 1024, %s222, [#allocation6], 64, 64, 4
        $region16: #{tpu_custom_call.1} parent=11 // pred_fallthru
          _
        // Predicated region
        $region17: #{tpu_custom_call.1} parent=11 // pred_check
          %p228 = pneg %p89
        $region18: #{tpu_custom_call.1} parent=11 // pred_check_branch
          %230 = sbr.rel (%p228) target = $region20
        $region19: #{tpu_custom_call.1} parent=11 // pred_region
          _
        $region20: #{tpu_custom_call.1} parent=11 // pred_fallthru
          _
        // Predicated region
        $region21: #{tpu_custom_call.1} parent=11 // pred_check
          %p231 = pneg %p110
        $region22: #{tpu_custom_call.1} parent=11 // pred_check_branch
          %233 = sbr.rel (%p231) target = $region24
        $region23: #{tpu_custom_call.1} parent=11 // pred_region
          %235 = vsyncadd [#allocation6], 0
          %s236 = sshll.u32 %s3, 4
          %s237 = int_to_ptr.hbm [resolvable:$true] %s236
          %s238 = sshll.u32 [#allocation7], 4
          %s239 = int_to_ptr.vmem [resolvable:$true] %s238
          %244 = dma.hbm_to_vmem [thread:$0]  %s237, 1024, %s239, [#allocation6], 64, 64, 4
        $region24: #{tpu_custom_call.1} parent=11 // pred_fallthru
          _
        // Predicated region
        $region25: #{tpu_custom_call.1} parent=11 // pred_check
          %p245 = pneg %p131
        $region26: #{tpu_custom_call.1} parent=11 // pred_check_branch
          %247 = sbr.rel (%p245) target = $region28
        $region27: #{tpu_custom_call.1} parent=11 // pred_region
          %249 = vsyncadd [#allocation9], 0
          %s251 = sshll.u32 %s4, 4
          %s252 = int_to_ptr.hbm [resolvable:$true] %s251
          %s253 = sshll.u32 [#allocation8], 4
          %s254 = int_to_ptr.vmem [resolvable:$true] %s253
          %256 = dma.hbm_to_vmem [thread:$0]  %s252, 16, %s254, [#allocation9]
        $region28: #{tpu_custom_call.1} parent=11 // pred_fallthru
          _
        // Predicated region
        $region29: #{tpu_custom_call.1} parent=11 // pred_check
          %p257 = pneg %p152
        $region30: #{tpu_custom_call.1} parent=11 // pred_check_branch
          %259 = sbr.rel (%p257) target = $region32
        $region31: #{tpu_custom_call.1} parent=11 // pred_region
          %261 = vsyncadd [#allocation9], 0
          %s262 = sshll.u32 %s5, 4
          %s263 = int_to_ptr.hbm [resolvable:$true] %s262
          %s264 = sshll.u32 [#allocation10], 4
          %s265 = int_to_ptr.vmem [resolvable:$true] %s264
          %270 = dma.hbm_to_vmem [thread:$0]  %s263, 2048, %s265, [#allocation9], 128, 128, 8
        $region32: #{tpu_custom_call.1} parent=11 // pred_fallthru
          _
        // Predicated region
        $region33: #{tpu_custom_call.1} parent=11 // pred_check
          %p271 = pneg %p173
        $region34: #{tpu_custom_call.1} parent=11 // pred_check_branch
          %273 = sbr.rel (%p271) target = $region36
        $region35: #{tpu_custom_call.1} parent=11 // pred_region
          _
        $region36: #{tpu_custom_call.1} parent=11 // pred_fallthru
          _
      $region12: #{tpu_custom_call.1} parent=5 // pred_fallthru
        _
      %p274 = scmp.lt.s32.totalorder %s21, 2
      // Predicated region
      $region37: #{tpu_custom_call.1} parent=5 // pred_check
        %p275 = pneg %p274
      $region38: #{tpu_custom_call.1} parent=5 // pred_check_branch
        %277 = sbr.rel (%p275) target = $region40
      $region39: #{tpu_custom_call.1} parent=5 // pred_region
        // Predicated region
        $region41: #{tpu_custom_call.1} parent=39 // pred_check
          %p278 = pneg %p41
        $region42: #{tpu_custom_call.1} parent=39 // pred_check_branch
          %280 = sbr.rel (%p278) target = $region44
        $region43: #{tpu_custom_call.1} parent=39 // pred_region
          %s281 = sand.u32 %s31, 1
          %s282 = scalar_lea.sflag [#allocation3], %s281
          %s283 = sand.u32 %s31, 1
          %s284 = smul.addr %s283, 32
          %s285 = scalar_lea.vmem [#allocation2], %s284
          %s286 = smul.u32 4, %s21
          %s287 = ssub.s32 7, %s286
          %p288 = scmp.lt.s32.totalorder %s287, 4
          %s289 = scalar_select %p288, %s287, 4
          %s290 = smul.u32 8, %s289
          %s291 = ssub.s32 32, %s290
          %s292 = sshll.u32 %s291, 4
          %293 = vsyncadd %s282, %s292
          %p294 = scmp.ne.s32.totalorder 0, %s290
          %s295 = smul.addr %s286, 8
          %s296 = scalar_lea.hbm %s0, %s295
          %s297 = smul.u32 8, %s289
          %s298 = sshll.u32 %s296, 4
          %s299 = int_to_ptr.hbm [resolvable:$true] %s298
          %s300 = sshll.u32 %s285, 4
          %s301 = int_to_ptr.vmem [resolvable:$true] %s300
          %s302 = sshll.u32 %s297, 4
          %306 = dma.hbm_to_vmem [thread:$0]  (%p294), %s299, %s302, %s301, %s282, 128, 128, 8
        $region44: #{tpu_custom_call.1} parent=39 // pred_fallthru
          _
      $region40: #{tpu_custom_call.1} parent=5 // pred_fallthru
        _
      %p307 = scmp.le.s32.totalorder 1, %s21
      %p308 = scmp.lt.s32.totalorder %s21, 3
      %p309 = pnand %p307, %p308
      %p310 = pneg %p309
      // Predicated region
      $region45: #{tpu_custom_call.1} parent=5 // pred_check
        _
      $region46: #{tpu_custom_call.1} parent=5 // pred_check_branch
        %312 = sbr.rel (%p309) target = $region48
      $region47: #{tpu_custom_call.1} parent=5 // pred_region
        %s313 = ssub.s32 %s21, 1
        %s314 = sand.u32 %s34, 1
        %s315 = scalar_lea.sflag [#allocation3], %s314
        %s316 = sand.u32 %s34, 1
        %s317 = smul.addr %s316, 32
        %s318 = scalar_lea.vmem [#allocation2], %s317
        // Predicated region
        $region49: #{tpu_custom_call.1} parent=47 // pred_check
          %p319 = pneg %p47
        $region50: #{tpu_custom_call.1} parent=47 // pred_check_branch
          %321 = sbr.rel (%p319) target = $region52
        $region51: #{tpu_custom_call.1} parent=47 // pred_region
          %323 = dma.done %s315, 512
        $region52: #{tpu_custom_call.1} parent=47 // pred_fallthru
          _
        // Predicated region
        $region53: #{tpu_custom_call.1} parent=47 // pred_check
          %p324 = pneg %p68
        $region54: #{tpu_custom_call.1} parent=47 // pred_check_branch
          %326 = sbr.rel (%p324) target = $region56
        $region55: #{tpu_custom_call.1} parent=47 // pred_region
          %328 = dma.done [#allocation6], 1024
        $region56: #{tpu_custom_call.1} parent=47 // pred_fallthru
          _
        // Predicated region
        $region57: #{tpu_custom_call.1} parent=47 // pred_check
          %p329 = pneg %p110
        $region58: #{tpu_custom_call.1} parent=47 // pred_check_branch
          %331 = sbr.rel (%p329) target = $region60
        $region59: #{tpu_custom_call.1} parent=47 // pred_region
          %333 = dma.done [#allocation6], 1024
        $region60: #{tpu_custom_call.1} parent=47 // pred_fallthru
          _
        // Predicated region
        $region61: #{tpu_custom_call.1} parent=47 // pred_check
          %p334 = pneg %p131
        $region62: #{tpu_custom_call.1} parent=47 // pred_check_branch
          %336 = sbr.rel (%p334) target = $region64
        $region63: #{tpu_custom_call.1} parent=47 // pred_region
          %338 = dma.done [#allocation9], 16
        $region64: #{tpu_custom_call.1} parent=47 // pred_fallthru
          _
        // Predicated region
        $region65: #{tpu_custom_call.1} parent=47 // pred_check
          %p339 = pneg %p152
        $region66: #{tpu_custom_call.1} parent=47 // pred_check_branch
          %341 = sbr.rel (%p339) target = $region68
        $region67: #{tpu_custom_call.1} parent=47 // pred_region
          %343 = dma.done [#allocation9], 2048
        $region68: #{tpu_custom_call.1} parent=47 // pred_fallthru
          _
        %s344 = sand.u32 %s34, 1
        %s345 = scalar_lea.sflag [#allocation3], %s344
        %s346 = sand.u32 %s34, 1
        %s347 = smul.addr %s346, 32
        %s348 = scalar_lea.vmem [#allocation2], %s347
        %p349 = pneg %p47
        %p350 = pneg %p44
        %p351 = pneg %p68
        %p352 = pneg %p65
        %p353 = pneg %p89
        %p354 = pneg %p86
        %p355 = pneg %p110
        %p356 = pneg %p107
        %p357 = pneg %p131
        %p358 = pneg %p128
        %p359 = pneg %p152
        %p360 = pneg %p149
        %p361 = pneg %p173
        %p362 = pneg %p170
        %p363 = pneg %p199
        %p364 = pneg %p196
        %s365 = sand.u32 %s186, 1
        %s366 = scalar_lea.sflag [#allocation4], %s365
        %s367 = sand.u32 %s186, 1
        %s368 = smul.addr %s367, 64
        %s369 = scalar_lea.vmem [#allocation11], %s368
        %s370 = smul.u32 4, %s26
        %s371 = ssub.s32 7, %s370
        %p372 = scmp.lt.s32.totalorder %s371, 4
        %s373 = scalar_select %p372, %s371, 4
        %s374 = smul.u32 8, %s373
        %s375 = smul.u32 4, %s26
        %s376 = ssub.s32 7, %s375
        %p377 = scmp.lt.s32.totalorder %s376, 4
        %s378 = scalar_select %p377, %s376, 4
        %s379 = smul.u32 8, %s378
        %s380 = smul.u32 %s379, 2
        %v381 = vld [vmem:[%s318] sm:$0xff]
        %v382 = vld [vmem:[%s318 + $0x8] sm:$0xff]
        %v383 = vld [vmem:[%s318 + $0x10] sm:$0xff]
        %v384 = vld [vmem:[%s318 + $0x18] sm:$0xff]
        %v385 = vpack.c.bf16 %v382, %v381
        %v386 = vpack.c.bf16 %v384, %v383
        %v387 = vld [vmem:[#allocation5] sm:$0xf]
        %v388 = vld [vmem:[#allocation5 + $0x4] sm:$0xf]
        %v389 = vld [vmem:[#allocation5 + $0x8] sm:$0xf]
        %v390 = vld [vmem:[#allocation5 + $0xc] sm:$0xf]
        %v391 = vld [vmem:[#allocation5 + $0x10] sm:$0xf]
        %v392 = vld [vmem:[#allocation5 + $0x14] sm:$0xf]
        %v393 = vld [vmem:[#allocation5 + $0x18] sm:$0xf]
        %v394 = vld [vmem:[#allocation5 + $0x1c] sm:$0xf]
        %v395 = vld [vmem:[#allocation5 + $0x20] sm:$0xf]
        %v396 = vld [vmem:[#allocation5 + $0x24] sm:$0xf]
        %v397 = vld [vmem:[#allocation5 + $0x28] sm:$0xf]
        %v398 = vld [vmem:[#allocation5 + $0x2c] sm:$0xf]
        %v399 = vld [vmem:[#allocation5 + $0x30] sm:$0xf]
        %v400 = vld [vmem:[#allocation5 + $0x34] sm:$0xf]
        %v401 = vld [vmem:[#allocation5 + $0x38] sm:$0xf]
        %v402 = vld [vmem:[#allocation5 + $0x3c] sm:$0xf]
        %v403 = vld [vmem:[%s2] sm:$0x1]
        %v405 = vperm.slane %v403, 0
        %v423 = vunpack.c.l.b16 %v387
        %v424 = vunpack.c.l.b16 %v388
        %v425 = vunpack.c.l.b16 %v389
        %v426 = vunpack.c.l.b16 %v390
        %v427 = vunpack.c.l.b16 %v391
        %v428 = vunpack.c.l.b16 %v392
        %v429 = vunpack.c.l.b16 %v393
        %v430 = vunpack.c.l.b16 %v394
        %v431 = vunpack.c.l.b16 %v395
        %v432 = vunpack.c.l.b16 %v396
        %v433 = vunpack.c.l.b16 %v397
        %v434 = vunpack.c.l.b16 %v398
        %v435 = vunpack.c.l.b16 %v399
        %v436 = vunpack.c.l.b16 %v400
        %v437 = vunpack.c.l.b16 %v401
        %v438 = vunpack.c.l.b16 %v402
        %v439 = vpack.c.b16 %v424, %v423
        %v440 = vpack.c.b16 %v426, %v425
        %v441 = vpack.c.b16 %v428, %v427
        %v442 = vpack.c.b16 %v430, %v429
        %v443 = vpack.c.b16 %v432, %v431
        %v444 = vpack.c.b16 %v434, %v433
        %v445 = vpack.c.b16 %v436, %v435
        %v446 = vpack.c.b16 %v438, %v437
        %455 = vmatpush.bf16.msra.mxu0 %v446
        %456 = vmatpush.bf16.msra.mxu0 %v445
        %457 = vmatpush.bf16.msra.mxu0 %v444
        %458 = vmatpush.bf16.msra.mxu0 %v443
        %459 = vmatpush.bf16.msra.mxu0 %v442
        %460 = vmatpush.bf16.msra.mxu0 %v441
        %461 = vmatpush.bf16.msra.mxu0 %v440
        %462 = vmatpush.bf16.msra.mxu0 %v439
        %463 = vmatmul.bf16.gmra.mxu0 %v385
        %v464 = vpop.f32.mrf.mxu0
        %v465 = vadd.f32 %v405, %v464
        %v466 = vpop.f32.mrf.mxu0
        %v467 = vadd.f32 %v405, %v466
        %468 = vmatmul.bf16.gmra.mxu0 %v386
        %v469 = vpop.f32.mrf.mxu0
        %v470 = vadd.f32 %v405, %v469
        %v471 = vpop.f32.mrf.mxu0
        %v472 = vadd.f32 %v405, %v471
        %473 = vdwg.mxu0
        %v474 = vmul.f32 %v465, 0.2
        %v475 = vmul.f32 %v467, 0.2
        %v476 = vmul.f32 %v470, 0.2
        %v477 = vmul.f32 %v472, 0.2
        %v478 = vmax.f32 %v465, %v474
        %v479 = vmax.f32 %v467, %v475
        %v480 = vmax.f32 %v470, %v476
        %v481 = vmax.f32 %v472, %v477
        %v482 = vpack.c.bf16 %v479, %v478
        %v483 = vpack.c.bf16 %v481, %v480
        %v484 = vld [vmem:[#allocation7] sm:$0xf]
        %v485 = vld [vmem:[#allocation7 + $0x4] sm:$0xf]
        %v486 = vld [vmem:[#allocation7 + $0x8] sm:$0xf]
        %v487 = vld [vmem:[#allocation7 + $0xc] sm:$0xf]
        %v488 = vld [vmem:[#allocation7 + $0x10] sm:$0xf]
        %v489 = vld [vmem:[#allocation7 + $0x14] sm:$0xf]
        %v490 = vld [vmem:[#allocation7 + $0x18] sm:$0xf]
        %v491 = vld [vmem:[#allocation7 + $0x1c] sm:$0xf]
        %v492 = vld [vmem:[#allocation7 + $0x20] sm:$0xf]
        %v493 = vld [vmem:[#allocation7 + $0x24] sm:$0xf]
        %v494 = vld [vmem:[#allocation7 + $0x28] sm:$0xf]
        %v495 = vld [vmem:[#allocation7 + $0x2c] sm:$0xf]
        %v496 = vld [vmem:[#allocation7 + $0x30] sm:$0xf]
        %v497 = vld [vmem:[#allocation7 + $0x34] sm:$0xf]
        %v498 = vld [vmem:[#allocation7 + $0x38] sm:$0xf]
        %v499 = vld [vmem:[#allocation7 + $0x3c] sm:$0xf]
        %v500 = vld [vmem:[#allocation8] sm:$0x1]
        %v502 = vperm.slane %v500, 0
        %v520 = vunpack.c.l.b16 %v484
        %v521 = vunpack.c.l.b16 %v485
        %v522 = vunpack.c.l.b16 %v486
        %v523 = vunpack.c.l.b16 %v487
        %v524 = vunpack.c.l.b16 %v488
        %v525 = vunpack.c.l.b16 %v489
        %v526 = vunpack.c.l.b16 %v490
        %v527 = vunpack.c.l.b16 %v491
        %v528 = vunpack.c.l.b16 %v492
        %v529 = vunpack.c.l.b16 %v493
        %v530 = vunpack.c.l.b16 %v494
        %v531 = vunpack.c.l.b16 %v495
        %v532 = vunpack.c.l.b16 %v496
        %v533 = vunpack.c.l.b16 %v497
        %v534 = vunpack.c.l.b16 %v498
        %v535 = vunpack.c.l.b16 %v499
        %v536 = vpack.c.b16 %v521, %v520
        %v537 = vpack.c.b16 %v523, %v522
        %v538 = vpack.c.b16 %v525, %v524
        %v539 = vpack.c.b16 %v527, %v526
        %v540 = vpack.c.b16 %v529, %v528
        %v541 = vpack.c.b16 %v531, %v530
        %v542 = vpack.c.b16 %v533, %v532
        %v543 = vpack.c.b16 %v535, %v534
        %552 = vmatpush.bf16.msra.mxu0 %v543
        %553 = vmatpush.bf16.msra.mxu0 %v542
        %554 = vmatpush.bf16.msra.mxu0 %v541
        %555 = vmatpush.bf16.msra.mxu0 %v540
        %556 = vmatpush.bf16.msra.mxu0 %v539
        %557 = vmatpush.bf16.msra.mxu0 %v538
        %558 = vmatpush.bf16.msra.mxu0 %v537
        %559 = vmatpush.bf16.msra.mxu0 %v536
        %560 = vmatmul.bf16.gmra.mxu0 %v482
        %v561 = vpop.f32.mrf.mxu0
        %v562 = vadd.f32 %v502, %v561
        %v563 = vpop.f32.mrf.mxu0
        %v564 = vadd.f32 %v502, %v563
        %565 = vmatmul.bf16.gmra.mxu0 %v483
        %v566 = vpop.f32.mrf.mxu0
        %v567 = vadd.f32 %v502, %v566
        %v568 = vpop.f32.mrf.mxu0
        %v569 = vadd.f32 %v502, %v568
        %570 = vdwg.mxu0
        %v571 = vmul.f32 %v562, 0.2
        %v572 = vmul.f32 %v564, 0.2
        %v573 = vmul.f32 %v567, 0.2
        %v574 = vmul.f32 %v569, 0.2
        %v575 = vmax.f32 %v562, %v571
        %v576 = vmax.f32 %v564, %v572
        %v577 = vmax.f32 %v567, %v573
        %v578 = vmax.f32 %v569, %v574
        %v579 = vpack.c.bf16 %v576, %v575
        %v580 = vpack.c.bf16 %v578, %v577
        %v581 = vld [vmem:[#allocation10] sm:$0xff]
        %v582 = vld [vmem:[#allocation10 + $0x8] sm:$0xff]
        %v583 = vld [vmem:[#allocation10 + $0x10] sm:$0xff]
        %v584 = vld [vmem:[#allocation10 + $0x18] sm:$0xff]
        %v585 = vld [vmem:[#allocation10 + $0x20] sm:$0xff]
        %v586 = vld [vmem:[#allocation10 + $0x28] sm:$0xff]
        %v587 = vld [vmem:[#allocation10 + $0x30] sm:$0xff]
        %v588 = vld [vmem:[#allocation10 + $0x38] sm:$0xff]
        %v589 = vld [vmem:[#allocation10 + $0x40] sm:$0xff]
        %v590 = vld [vmem:[#allocation10 + $0x48] sm:$0xff]
        %v591 = vld [vmem:[#allocation10 + $0x50] sm:$0xff]
        %v592 = vld [vmem:[#allocation10 + $0x58] sm:$0xff]
        %v593 = vld [vmem:[#allocation10 + $0x60] sm:$0xff]
        %v594 = vld [vmem:[#allocation10 + $0x68] sm:$0xff]
        %v595 = vld [vmem:[#allocation10 + $0x70] sm:$0xff]
        %v596 = vld [vmem:[#allocation10 + $0x78] sm:$0xff]
        %v597 = vld [vmem:[%s6] sm:$0x3]
        %v599 = vperm.slane %v597, 0
        %v600 = vperm.slane %v597, 1
        %v619 = vunpack.c.l.b16 %v581
        %v620 = vunpack.c.h.b16 %v581
        %v621 = vunpack.c.l.b16 %v582
        %v622 = vunpack.c.h.b16 %v582
        %v623 = vunpack.c.l.b16 %v583
        %v624 = vunpack.c.h.b16 %v583
        %v625 = vunpack.c.l.b16 %v584
        %v626 = vunpack.c.h.b16 %v584
        %v627 = vunpack.c.l.b16 %v585
        %v628 = vunpack.c.h.b16 %v585
        %v629 = vunpack.c.l.b16 %v586
        %v630 = vunpack.c.h.b16 %v586
        %v631 = vunpack.c.l.b16 %v587
        %v632 = vunpack.c.h.b16 %v587
        %v633 = vunpack.c.l.b16 %v588
        %v634 = vunpack.c.h.b16 %v588
        %v635 = vunpack.c.l.b16 %v589
        %v636 = vunpack.c.h.b16 %v589
        %v637 = vunpack.c.l.b16 %v590
        %v638 = vunpack.c.h.b16 %v590
        %v639 = vunpack.c.l.b16 %v591
        %v640 = vunpack.c.h.b16 %v591
        %v641 = vunpack.c.l.b16 %v592
        %v642 = vunpack.c.h.b16 %v592
        %v643 = vunpack.c.l.b16 %v593
        %v644 = vunpack.c.h.b16 %v593
        %v645 = vunpack.c.l.b16 %v594
        %v646 = vunpack.c.h.b16 %v594
        %v647 = vunpack.c.l.b16 %v595
        %v648 = vunpack.c.h.b16 %v595
        %v649 = vunpack.c.l.b16 %v596
        %v650 = vunpack.c.h.b16 %v596
        %v651 = vpack.c.b16 %v621, %v619
        %v652 = vpack.c.b16 %v622, %v620
        %v653 = vpack.c.b16 %v625, %v623
        %v654 = vpack.c.b16 %v626, %v624
        %v655 = vpack.c.b16 %v629, %v627
        %v656 = vpack.c.b16 %v630, %v628
        %v657 = vpack.c.b16 %v633, %v631
        %v658 = vpack.c.b16 %v634, %v632
        %v659 = vpack.c.b16 %v637, %v635
        %v660 = vpack.c.b16 %v638, %v636
        %v661 = vpack.c.b16 %v641, %v639
        %v662 = vpack.c.b16 %v642, %v640
        %v663 = vpack.c.b16 %v645, %v643
        %v664 = vpack.c.b16 %v646, %v644
        %v665 = vpack.c.b16 %v649, %v647
        %v666 = vpack.c.b16 %v650, %v648
        %683 = vmatpush.bf16.msra.mxu0 %v665
        %684 = vmatpush.bf16.msra.mxu0 %v663
        %685 = vmatpush.bf16.msra.mxu0 %v661
        %686 = vmatpush.bf16.msra.mxu0 %v659
        %687 = vmatpush.bf16.msra.mxu0 %v657
        %688 = vmatpush.bf16.msra.mxu0 %v655
        %689 = vmatpush.bf16.msra.mxu0 %v653
        %690 = vmatpush.bf16.msra.mxu0 %v651
        %691 = vmatmul.bf16.gmra.mxu0 %v579
        %v692 = vpop.f32.mrf.mxu0
        %v693 = vadd.f32 %v599, %v692
        %v694 = vpop.f32.mrf.mxu0
        %v695 = vadd.f32 %v599, %v694
        %696 = vmatmul.bf16.gmra.mxu0 %v580
        %v697 = vpop.f32.mrf.mxu0
        %v698 = vadd.f32 %v599, %v697
        %v699 = vpop.f32.mrf.mxu0
        %v700 = vadd.f32 %v599, %v699
        %701 = vdwg.mxu0
        %702 = vmatpush.bf16.msra.mxu0 %v666
        %703 = vmatpush.bf16.msra.mxu0 %v664
        %704 = vmatpush.bf16.msra.mxu0 %v662
        %705 = vmatpush.bf16.msra.mxu0 %v660
        %706 = vmatpush.bf16.msra.mxu0 %v658
        %707 = vmatpush.bf16.msra.mxu0 %v656
        %708 = vmatpush.bf16.msra.mxu0 %v654
        %709 = vmatpush.bf16.msra.mxu0 %v652
        %710 = vmatmul.bf16.gmra.mxu0 %v579
        %v711 = vpop.f32.mrf.mxu0
        %v712 = vadd.f32 %v600, %v711
        %v713 = vpop.f32.mrf.mxu0
        %v714 = vadd.f32 %v600, %v713
        %715 = vmatmul.bf16.gmra.mxu0 %v580
        %v716 = vpop.f32.mrf.mxu0
        %v717 = vadd.f32 %v600, %v716
        %v718 = vpop.f32.mrf.mxu0
        %v719 = vadd.f32 %v600, %v718
        %720 = vdwg.mxu0
        %721 = vst [vmem:[%s369] sm:$0xff] %v693
        %722 = vst [vmem:[%s369 + $0x8] sm:$0xff] %v712
        %723 = vst [vmem:[%s369 + $0x10] sm:$0xff] %v695
        %724 = vst [vmem:[%s369 + $0x18] sm:$0xff] %v714
        %725 = vst [vmem:[%s369 + $0x20] sm:$0xff] %v698
        %726 = vst [vmem:[%s369 + $0x28] sm:$0xff] %v717
        %727 = vst [vmem:[%s369 + $0x30] sm:$0xff] %v700
        %728 = vst [vmem:[%s369 + $0x38] sm:$0xff] %v719
        %s729 = sand.u32 %s186, 1
        %s730 = scalar_lea.sflag [#allocation4], %s729
        %s731 = sand.u32 %s186, 1
        %s732 = smul.addr %s731, 64
        %s733 = scalar_lea.vmem [#allocation11], %s732
        // Predicated region
        $region69: #{tpu_custom_call.1} parent=47 // pred_check
          %p734 = pneg %p196
        $region70: #{tpu_custom_call.1} parent=47 // pred_check_branch
          %736 = sbr.rel (%p734) target = $region72
        $region71: #{tpu_custom_call.1} parent=47 // pred_region
          %s737 = smul.u32 4, %s26
          %s738 = ssub.s32 7, %s737
          %p739 = scmp.lt.s32.totalorder %s738, 4
          %s740 = scalar_select %p739, %s738, 4
          %s741 = smul.u32 8, %s740
          %s742 = smul.u32 %s741, 2
          %s743 = ssub.s32 64, %s742
          %s744 = sshll.u32 %s743, 4
          %745 = vsyncadd %s730, %s744
          %p746 = scmp.ne.s32.totalorder 0, %s742
          %s747 = smul.addr %s737, 2
          %s748 = smul.addr %s747, 8
          %s749 = scalar_lea.hbm %s7, %s748
          %s750 = smul.u32 16, %s740
          %s751 = sshll.u32 %s733, 4
          %s752 = int_to_ptr.vmem [resolvable:$true] %s751
          %s753 = sshll.u32 %s749, 4
          %s754 = int_to_ptr.hbm [resolvable:$true] %s753
          %s755 = sshll.u32 %s750, 4
          %759 = dma.vmem_to_hbm [thread:$0]  (%p746), %s752, %s755, %s754, %s730, 256, 256, 16
        $region72: #{tpu_custom_call.1} parent=47 // pred_fallthru
          _
      $region48: #{tpu_custom_call.1} parent=5 // pred_fallthru
        _
      %p760 = scmp.le.s32.totalorder 2, %s21
      // Predicated region
      $region73: #{tpu_custom_call.1} parent=5 // pred_check
        %p761 = pneg %p760
      $region74: #{tpu_custom_call.1} parent=5 // pred_check_branch
        %763 = sbr.rel (%p761) target = $region76
      $region75: #{tpu_custom_call.1} parent=5 // pred_region
        %s764 = ssub.s32 %s21, 2
        // Predicated region
        $region77: #{tpu_custom_call.1} parent=75 // pred_check
          %p765 = pneg %p202
        $region78: #{tpu_custom_call.1} parent=75 // pred_check_branch
          %767 = sbr.rel (%p765) target = $region80
        $region79: #{tpu_custom_call.1} parent=75 // pred_region
          %s768 = sand.u32 %s187, 1
          %s769 = scalar_lea.sflag [#allocation4], %s768
          %s770 = sand.u32 %s187, 1
          %s771 = smul.addr %s770, 64
          %s772 = scalar_lea.vmem [#allocation11], %s771
          %774 = dma.done %s769, 1024
        $region80: #{tpu_custom_call.1} parent=75 // pred_fallthru
          _
      $region76: #{tpu_custom_call.1} parent=5 // pred_fallthru
        _
    $region6: #{tpu_custom_call.1} parent=1 // loop_footer
      %s25 = sadd.s32 1, %s21
    $region7: #{tpu_custom_call.1} parent=1 // loop_footer_branch
      %20 = sbr.rel target = $region3
    $region8: #{tpu_custom_call.1} parent=1 // loop_exit
      _
    %775 = vsyncpa [#allocation3], 1
    %s776 = scalar_lea.sflag [#allocation3], 1
    %777 = vsyncpa %s776, 1
    %778 = vsyncpa [#allocation6], 1
    %779 = vsyncpa [#allocation9], 1
    %780 = vsyncpa [#allocation4], 1
    %s781 = scalar_lea.sflag [#allocation4], 1
    %782 = vsyncpa %s781, 1

</llo_original>
